<compile_context>
chip_gen: v7x
topology: tpu7x:2x2x1
jax: 0.10.0
libtpu: 0.0.40
codegen_flags: <defaults>
</compile_context>

<pallas_src>
import jax
import jax.numpy as jnp
from jax import lax
from jax.experimental import pallas as pl
from jax.experimental.pallas import tpu as pltpu


def _lstm_kernel(x_ref, wih_ref, whh_ref, b_ref, wfc_ref, bfc_ref,
                 out_ref, gx_ref):
    T, Bt, E = x_ref.shape
    Hp, G = whh_ref.shape            # G == 4 * Hp

    # ---- Phase 1: hoisted input projection (one batched MXU matmul) -------
    x_all = x_ref[...].reshape(T * Bt, E)
    gx = jnp.dot(x_all, wih_ref[...],
                 preferred_element_type=jnp.float32) + b_ref[...]
    gx_ref[...] = gx.reshape(T, Bt, G)

    # ---- Phase 2: serial recurrence (only h @ W_hh on the critical path) ---
    def step(t, carry):
        h, c = carry
        gates = gx_ref[t] + jnp.dot(h, whh_ref[...],
                                    preferred_element_type=jnp.float32)
        # Lane-aligned gate slices (Hp is a multiple of 128).
        i_g = jax.nn.sigmoid(gates[:, 0 * Hp:1 * Hp])
        f_g = jax.nn.sigmoid(gates[:, 1 * Hp:2 * Hp])
        g_g = jnp.tanh(gates[:, 2 * Hp:3 * Hp])
        o_g = jax.nn.sigmoid(gates[:, 3 * Hp:4 * Hp])
        c = f_g * c + i_g * g_g
        h = o_g * jnp.tanh(c)
        return (h, c)

    h0 = jnp.zeros((Bt, Hp), jnp.float32)
    c0 = jnp.zeros((Bt, Hp), jnp.float32)
    h, _ = lax.fori_loop(0, T, step, (h0, c0), unroll=T <= 32)

    # ---- Phase 3: final FC + sigmoid ---------------------------------------
    logits = jnp.dot(h, wfc_ref[...],
                     preferred_element_type=jnp.float32) + bfc_ref[...]
    out_ref[...] = jax.nn.sigmoid(logits)


def _round_up(x, m):
    return ((x + m - 1) // m) * m


def _pad_gate_cols(w, H, Hp):
    """Re-layout the 4H gate axis so each gate owns a zero-padded Hp slot."""
    if H == Hp:
        return w
    parts = []
    for k in range(4):
        p = w[..., k * H:(k + 1) * H]
        pad = [(0, 0)] * (w.ndim - 1) + [(0, Hp - H)]
        parts.append(jnp.pad(p, pad))
    return jnp.concatenate(parts, axis=-1)


def sentiment_lstm_forward(x_tokens, params, noise=0.0):
    """x_tokens: int32 (B, T).  Returns (B, 1) float32 in (0, 1)."""
    emb_table = params["embedding"]           # (V, E)
    w_ih = params["w_ih"]                     # (E, 4H)
    w_hh = params["w_hh"]                     # (H, 4H)
    b = params["b"]                           # (1, 4H)  (= b_ih + b_hh)
    w_fc = params["w_fc"]                     # (H, 1)
    b_fc = params["b_fc"]                     # (1, 1)

    B, T = x_tokens.shape
    E = emb_table.shape[1]
    H = w_hh.shape[0]

    # TPU-friendly padding: hidden dim to lane multiple, batch to sublane tile.
    Hp = _round_up(H, 128)
    Bt = min(_round_up(B, 8), 128)            # batch tile per grid step
    Bp = _round_up(B, Bt)

    # Zero-padding keeps padded h/c lanes exactly zero -> results unchanged.
    w_ih_p = _pad_gate_cols(w_ih, H, Hp)                                  # (E, 4Hp)
    w_hh_p = _pad_gate_cols(jnp.pad(w_hh, ((0, Hp - H), (0, 0))), H, Hp)  # (Hp, 4Hp)
    b_p = _pad_gate_cols(b, H, Hp)                                        # (1, 4Hp)
    w_fc_p = jnp.pad(w_fc, ((0, Hp - H), (0, 0)))                         # (Hp, 1)

    # Embedding lookup (gather).  Indexing with (T, Bp) token ids yields the
    # time-major (T, Bp, E) slab directly -- no wrapper-side float transpose.
    tok = x_tokens if Bp == B else jnp.pad(x_tokens, ((0, Bp - B), (0, 0)))
    embedded = jnp.take(emb_table, tok.T, axis=0).astype(jnp.float32)     # (T, Bp, E)
    # TODO(synk): noise != 0 path (torch.randn_like * noise) not implemented;
    # forward default (noise=0) is exact.

    out = pl.pallas_call(
        _lstm_kernel,
        out_shape=jax.ShapeDtypeStruct((Bp, 1), jnp.float32),
        grid_spec=pltpu.PrefetchScalarGridSpec(
            num_scalar_prefetch=0,
            grid=(Bp // Bt,),                                   # batch tiles only
            in_specs=[
                pl.BlockSpec((T, Bt, E), lambda i: (0, i, 0)),  # (T, Bt, E) slab
                pl.BlockSpec((E, 4 * Hp), lambda i: (0, 0)),    # W_ih
                pl.BlockSpec((Hp, 4 * Hp), lambda i: (0, 0)),   # W_hh
                pl.BlockSpec((1, 4 * Hp), lambda i: (0, 0)),    # bias
                pl.BlockSpec((Hp, 1), lambda i: (0, 0)),        # W_fc
                pl.BlockSpec((1, 1), lambda i: (0, 0)),         # b_fc
            ],
            out_specs=pl.BlockSpec((Bt, 1), lambda i: (i, 0)),
            scratch_shapes=[
                pltpu.VMEM((T, Bt, 4 * Hp), jnp.float32),       # hoisted x@W_ih+b
            ],
        ),
        compiler_params=pltpu.CompilerParams(
            dimension_semantics=("parallel",),                  # megacore over batch
        ),
    )(embedded, w_ih_p, w_hh_p, b_p, w_fc_p, b_fc)
    return out[:B]


def init_params(key, vocab_size, embedding_dim, hidden_dim):
    k = jax.random.split(key, 6)
    bound = 1.0 / jnp.sqrt(hidden_dim)
    return {
        "embedding": jax.random.normal(k[0], (vocab_size, embedding_dim), jnp.float32),
        "w_ih": jax.random.uniform(k[1], (embedding_dim, 4 * hidden_dim),
                                   jnp.float32, -bound, bound),
        "w_hh": jax.random.uniform(k[2], (hidden_dim, 4 * hidden_dim),
                                   jnp.float32, -bound, bound),
        "b": jax.random.uniform(k[3], (1, 4 * hidden_dim),
                                jnp.float32, -bound, bound),
        "w_fc": jax.random.uniform(k[4], (hidden_dim, 1),
                                   jnp.float32, -bound, bound),
        "b_fc": jax.random.uniform(k[5], (1, 1), jnp.float32, -bound, bound),
    }


def reference_forward(x_tokens, params):
    """Pure-JAX reference (mirrors the PyTorch forward with noise=0)."""
    emb = jnp.take(params["embedding"], x_tokens, axis=0)   # (B, T, E)
    B = x_tokens.shape[0]
    H = params["w_hh"].shape[0]

    def step(carry, x_t):
        h, c = carry
        gates = x_t @ params["w_ih"] + h @ params["w_hh"] + params["b"]
        i = jax.nn.sigmoid(gates[:, 0 * H:1 * H])
        f = jax.nn.sigmoid(gates[:, 1 * H:2 * H])
        g = jnp.tanh(gates[:, 2 * H:3 * H])
        o = jax.nn.sigmoid(gates[:, 3 * H:4 * H])
        c = f * c + i * g
        h = o * jnp.tanh(c)
        return (h, c), None

    h0 = jnp.zeros((B, H), jnp.float32)
    c0 = jnp.zeros((B, H), jnp.float32)
    (h, _), _ = lax.scan(step, (h0, c0), jnp.transpose(emb, (1, 0, 2)))
    return jax.nn.sigmoid(h @ params["w_fc"] + params["b_fc"])


if __name__ == "__main__":
    VOCAB, EMB, HID = 50, 16, 32
    B, T = 2, 8

    key = jax.random.PRNGKey(0)
    k_params, k_tokens = jax.random.split(key)
    params = init_params(k_params, VOCAB, EMB, HID)
    x_tokens = jax.random.randint(k_tokens, (B, T), 0, VOCAB, dtype=jnp.int32)

    out = jax.block_until_ready(sentiment_lstm_forward(x_tokens, params))
    ref = jax.block_until_ready(reference_forward(x_tokens, params))

    assert out.shape == (B, 1)
    assert jnp.allclose(out, ref, atol=1e-4, rtol=1e-4), (out, ref)

    print("KERNEL_OK")
</pallas_src>

<mosaic_0001>
module attributes {stable_mosaic.version = 11 : i64} {
  func.func @_lstm_kernel(%arg0: i32, %arg1: memref<8x8x16xf32, #tpu.memory_space<vmem>>, %arg2: memref<16x512xf32, #tpu.memory_space<vmem>>, %arg3: memref<128x512xf32, #tpu.memory_space<vmem>>, %arg4: memref<1x512xf32, #tpu.memory_space<vmem>>, %arg5: memref<128x1xf32, #tpu.memory_space<vmem>>, %arg6: memref<1x1xf32, #tpu.memory_space<vmem>>, %arg7: memref<8x1xf32, #tpu.memory_space<vmem>>, %arg8: memref<8x8x512xf32, #tpu.memory_space<vmem>>) attributes {dimension_semantics = [#tpu.dimension_semantics<parallel>], iteration_bounds = array<i64: 1>, scalar_prefetch = 0 : i64, scratch_operands = 1 : i64, tpu.core_type = #tpu.core_type<tc>, window_params = [{transform_indices = @transform_0, window_bounds = array<i64: 8, 8, 16>}, {pipeline_mode = #tpu.pipeline_mode<synchronous>, transform_indices = @transform_1, window_bounds = array<i64: 16, 512>}, {pipeline_mode = #tpu.pipeline_mode<synchronous>, transform_indices = @transform_2, window_bounds = array<i64: 128, 512>}, {pipeline_mode = #tpu.pipeline_mode<synchronous>, transform_indices = @transform_3, window_bounds = array<i64: 1, 512>}, {pipeline_mode = #tpu.pipeline_mode<synchronous>, transform_indices = @transform_4, window_bounds = array<i64: 128, 1>}, {pipeline_mode = #tpu.pipeline_mode<synchronous>, transform_indices = @transform_5, window_bounds = array<i64: 1, 1>}, {transform_indices = @transform_6, window_bounds = array<i64: 8, 1>}]} {
    %c0 = arith.constant 0 : index
    %c0_0 = arith.constant 0 : index
    %c0_1 = arith.constant 0 : index
    %0 = vector.load %arg1[%c0, %c0_0, %c0_1] : memref<8x8x16xf32, #tpu.memory_space<vmem>>, vector<8x8x16xf32>
    %1 = vector.shape_cast %0 : vector<8x8x16xf32> to vector<64x16xf32>
    %c0_2 = arith.constant 0 : index
    %c0_3 = arith.constant 0 : index
    %2 = vector.load %arg2[%c0_2, %c0_3] : memref<16x512xf32, #tpu.memory_space<vmem>>, vector<16x512xf32>
    %cst = arith.constant dense<0.000000e+00> : vector<64x512xf32>
    %3 = tpu.matmul %1, %2, %cst {dimension_numbers = #tpu.dot_dimension_numbers<[1], [0], [0], [1], [0, 0, 1, 1], [], []>} : vector<64x16xf32>, vector<16x512xf32>, vector<64x512xf32> -> vector<64x512xf32>
    %c0_4 = arith.constant 0 : index
    %c0_5 = arith.constant 0 : index
    %4 = vector.load %arg4[%c0_4, %c0_5] : memref<1x512xf32, #tpu.memory_space<vmem>>, vector<1x512xf32>
    %5 = vector.broadcast %4 : vector<1x512xf32> to vector<64x512xf32>
    %6 = arith.addf %3, %5 : vector<64x512xf32>
    %7 = vector.shape_cast %6 : vector<64x512xf32> to vector<8x8x512xf32>
    %c0_6 = arith.constant 0 : index
    %c0_7 = arith.constant 0 : index
    %c0_8 = arith.constant 0 : index
    %8 = vector.load %arg8[%c0_6, %c0_7, %c0_8] : memref<8x8x512xf32, #tpu.memory_space<vmem>>, vector<8x8x512xf32>
    tpu.vector_store %arg8[%c0_6, %c0_7, %c0_8], %7 {strides = array<i32>} : memref<8x8x512xf32, #tpu.memory_space<vmem>>, vector<8x8x512xf32>,
    %cst_9 = arith.constant 0.000000e+00 : f32
    %9 = vector.broadcast %cst_9 : f32 to vector<8x128xf32>
    %cst_10 = arith.constant 0.000000e+00 : f32
    %10 = vector.broadcast %cst_10 : f32 to vector<8x128xf32>
    %c0_i32 = arith.constant 0 : i32
    %11 = arith.index_cast %c0_i32 : i32 to index
    %c0_11 = arith.constant 0 : index
    %c0_12 = arith.constant 0 : index
    %12 = vector.load %arg8[%11, %c0_11, %c0_12] : memref<8x8x512xf32, #tpu.memory_space<vmem>>, vector<1x8x512xf32>
    %13 = vector.shape_cast %12 : vector<1x8x512xf32> to vector<8x512xf32>
    %c0_13 = arith.constant 0 : index
    %c0_14 = arith.constant 0 : index
    %14 = vector.load %arg3[%c0_13, %c0_14] : memref<128x512xf32, #tpu.memory_space<vmem>>, vector<128x512xf32>
    %cst_15 = arith.constant dense<0.000000e+00> : vector<8x512xf32>
    %15 = tpu.matmul %9, %14, %cst_15 {dimension_numbers = #tpu.dot_dimension_numbers<[1], [0], [0], [1], [0, 0, 1, 1], [], []>} : vector<8x128xf32>, vector<128x512xf32>, vector<8x512xf32> -> vector<8x512xf32>
    %16 = arith.addf %13, %15 : vector<8x512xf32>
    %17 = vector.extract_strided_slice %16 {offsets = [0, 0], sizes = [8, 128], strides = [1, 1]} : vector<8x512xf32> to vector<8x128xf32>
    %18 = arith.negf %17 : vector<8x128xf32>
    %19 = math.exp %18 : vector<8x128xf32>
    %cst_16 = arith.constant 1.000000e+00 : f32
    %20 = vector.broadcast %cst_16 : f32 to vector<8x128xf32>
    %21 = arith.addf %20, %19 : vector<8x128xf32>
    %22 = arith.divf %20, %21 : vector<8x128xf32>
    %23 = vector.extract_strided_slice %16 {offsets = [0, 128], sizes = [8, 128], strides = [1, 1]} : vector<8x512xf32> to vector<8x128xf32>
    %24 = arith.negf %23 : vector<8x128xf32>
    %25 = math.exp %24 : vector<8x128xf32>
    %cst_17 = arith.constant 1.000000e+00 : f32
    %26 = vector.broadcast %cst_17 : f32 to vector<8x128xf32>
    %27 = arith.addf %26, %25 : vector<8x128xf32>
    %28 = arith.divf %26, %27 : vector<8x128xf32>
    %29 = vector.extract_strided_slice %16 {offsets = [0, 256], sizes = [8, 128], strides = [1, 1]} : vector<8x512xf32> to vector<8x128xf32>
    %30 = math.tanh %29 : vector<8x128xf32>
    %31 = vector.extract_strided_slice %16 {offsets = [0, 384], sizes = [8, 128], strides = [1, 1]} : vector<8x512xf32> to vector<8x128xf32>
    %32 = arith.negf %31 : vector<8x128xf32>
    %33 = math.exp %32 : vector<8x128xf32>
    %cst_18 = arith.constant 1.000000e+00 : f32
    %34 = vector.broadcast %cst_18 : f32 to vector<8x128xf32>
    %35 = arith.addf %34, %33 : vector<8x128xf32>
    %36 = arith.divf %34, %35 : vector<8x128xf32>
    %37 = arith.mulf %28, %10 : vector<8x128xf32>
    %38 = arith.mulf %22, %30 : vector<8x128xf32>
    %39 = arith.addf %37, %38 : vector<8x128xf32>
    %40 = math.tanh %39 : vector<8x128xf32>
    %41 = arith.mulf %36, %40 : vector<8x128xf32>
    %c1_i32 = arith.constant 1 : i32
    %42 = arith.index_cast %c1_i32 : i32 to index
    %c0_19 = arith.constant 0 : index
    %c0_20 = arith.constant 0 : index
    %43 = vector.load %arg8[%42, %c0_19, %c0_20] : memref<8x8x512xf32, #tpu.memory_space<vmem>>, vector<1x8x512xf32>
    %44 = vector.shape_cast %43 : vector<1x8x512xf32> to vector<8x512xf32>
    %c0_21 = arith.constant 0 : index
    %c0_22 = arith.constant 0 : index
    %45 = vector.load %arg3[%c0_21, %c0_22] : memref<128x512xf32, #tpu.memory_space<vmem>>, vector<128x512xf32>
    %cst_23 = arith.constant dense<0.000000e+00> : vector<8x512xf32>
    %46 = tpu.matmul %41, %45, %cst_23 {dimension_numbers = #tpu.dot_dimension_numbers<[1], [0], [0], [1], [0, 0, 1, 1], [], []>} : vector<8x128xf32>, vector<128x512xf32>, vector<8x512xf32> -> vector<8x512xf32>
    %47 = arith.addf %44, %46 : vector<8x512xf32>
    %48 = vector.extract_strided_slice %47 {offsets = [0, 0], sizes = [8, 128], strides = [1, 1]} : vector<8x512xf32> to vector<8x128xf32>
    %49 = arith.negf %48 : vector<8x128xf32>
    %50 = math.exp %49 : vector<8x128xf32>
    %cst_24 = arith.constant 1.000000e+00 : f32
    %51 = vector.broadcast %cst_24 : f32 to vector<8x128xf32>
    %52 = arith.addf %51, %50 : vector<8x128xf32>
    %53 = arith.divf %51, %52 : vector<8x128xf32>
    %54 = vector.extract_strided_slice %47 {offsets = [0, 128], sizes = [8, 128], strides = [1, 1]} : vector<8x512xf32> to vector<8x128xf32>
    %55 = arith.negf %54 : vector<8x128xf32>
    %56 = math.exp %55 : vector<8x128xf32>
    %cst_25 = arith.constant 1.000000e+00 : f32
    %57 = vector.broadcast %cst_25 : f32 to vector<8x128xf32>
    %58 = arith.addf %57, %56 : vector<8x128xf32>
    %59 = arith.divf %57, %58 : vector<8x128xf32>
    %60 = vector.extract_strided_slice %47 {offsets = [0, 256], sizes = [8, 128], strides = [1, 1]} : vector<8x512xf32> to vector<8x128xf32>
    %61 = math.tanh %60 : vector<8x128xf32>
    %62 = vector.extract_strided_slice %47 {offsets = [0, 384], sizes = [8, 128], strides = [1, 1]} : vector<8x512xf32> to vector<8x128xf32>
    %63 = arith.negf %62 : vector<8x128xf32>
    %64 = math.exp %63 : vector<8x128xf32>
    %cst_26 = arith.constant 1.000000e+00 : f32
    %65 = vector.broadcast %cst_26 : f32 to vector<8x128xf32>
    %66 = arith.addf %65, %64 : vector<8x128xf32>
    %67 = arith.divf %65, %66 : vector<8x128xf32>
    %68 = arith.mulf %59, %39 : vector<8x128xf32>
    %69 = arith.mulf %53, %61 : vector<8x128xf32>
    %70 = arith.addf %68, %69 : vector<8x128xf32>
    %71 = math.tanh %70 : vector<8x128xf32>
    %72 = arith.mulf %67, %71 : vector<8x128xf32>
    %c2_i32 = arith.constant 2 : i32
    %73 = arith.index_cast %c2_i32 : i32 to index
    %c0_27 = arith.constant 0 : index
    %c0_28 = arith.constant 0 : index
    %74 = vector.load %arg8[%73, %c0_27, %c0_28] : memref<8x8x512xf32, #tpu.memory_space<vmem>>, vector<1x8x512xf32>
    %75 = vector.shape_cast %74 : vector<1x8x512xf32> to vector<8x512xf32>
    %c0_29 = arith.constant 0 : index
    %c0_30 = arith.constant 0 : index
    %76 = vector.load %arg3[%c0_29, %c0_30] : memref<128x512xf32, #tpu.memory_space<vmem>>, vector<128x512xf32>
    %cst_31 = arith.constant dense<0.000000e+00> : vector<8x512xf32>
    %77 = tpu.matmul %72, %76, %cst_31 {dimension_numbers = #tpu.dot_dimension_numbers<[1], [0], [0], [1], [0, 0, 1, 1], [], []>} : vector<8x128xf32>, vector<128x512xf32>, vector<8x512xf32> -> vector<8x512xf32>
    %78 = arith.addf %75, %77 : vector<8x512xf32>
    %79 = vector.extract_strided_slice %78 {offsets = [0, 0], sizes = [8, 128], strides = [1, 1]} : vector<8x512xf32> to vector<8x128xf32>
    %80 = arith.negf %79 : vector<8x128xf32>
    %81 = math.exp %80 : vector<8x128xf32>
    %cst_32 = arith.constant 1.000000e+00 : f32
    %82 = vector.broadcast %cst_32 : f32 to vector<8x128xf32>
    %83 = arith.addf %82, %81 : vector<8x128xf32>
    %84 = arith.divf %82, %83 : vector<8x128xf32>
    %85 = vector.extract_strided_slice %78 {offsets = [0, 128], sizes = [8, 128], strides = [1, 1]} : vector<8x512xf32> to vector<8x128xf32>
    %86 = arith.negf %85 : vector<8x128xf32>
    %87 = math.exp %86 : vector<8x128xf32>
    %cst_33 = arith.constant 1.000000e+00 : f32
    %88 = vector.broadcast %cst_33 : f32 to vector<8x128xf32>
    %89 = arith.addf %88, %87 : vector<8x128xf32>
    %90 = arith.divf %88, %89 : vector<8x128xf32>
    %91 = vector.extract_strided_slice %78 {offsets = [0, 256], sizes = [8, 128], strides = [1, 1]} : vector<8x512xf32> to vector<8x128xf32>
    %92 = math.tanh %91 : vector<8x128xf32>
    %93 = vector.extract_strided_slice %78 {offsets = [0, 384], sizes = [8, 128], strides = [1, 1]} : vector<8x512xf32> to vector<8x128xf32>
    %94 = arith.negf %93 : vector<8x128xf32>
    %95 = math.exp %94 : vector<8x128xf32>
    %cst_34 = arith.constant 1.000000e+00 : f32
    %96 = vector.broadcast %cst_34 : f32 to vector<8x128xf32>
    %97 = arith.addf %96, %95 : vector<8x128xf32>
    %98 = arith.divf %96, %97 : vector<8x128xf32>
    %99 = arith.mulf %90, %70 : vector<8x128xf32>
    %100 = arith.mulf %84, %92 : vector<8x128xf32>
    %101 = arith.addf %99, %100 : vector<8x128xf32>
    %102 = math.tanh %101 : vector<8x128xf32>
    %103 = arith.mulf %98, %102 : vector<8x128xf32>
    %c3_i32 = arith.constant 3 : i32
    %104 = arith.index_cast %c3_i32 : i32 to index
    %c0_35 = arith.constant 0 : index
    %c0_36 = arith.constant 0 : index
    %105 = vector.load %arg8[%104, %c0_35, %c0_36] : memref<8x8x512xf32, #tpu.memory_space<vmem>>, vector<1x8x512xf32>
    %106 = vector.shape_cast %105 : vector<1x8x512xf32> to vector<8x512xf32>
    %c0_37 = arith.constant 0 : index
    %c0_38 = arith.constant 0 : index
    %107 = vector.load %arg3[%c0_37, %c0_38] : memref<128x512xf32, #tpu.memory_space<vmem>>, vector<128x512xf32>
    %cst_39 = arith.constant dense<0.000000e+00> : vector<8x512xf32>
    %108 = tpu.matmul %103, %107, %cst_39 {dimension_numbers = #tpu.dot_dimension_numbers<[1], [0], [0], [1], [0, 0, 1, 1], [], []>} : vector<8x128xf32>, vector<128x512xf32>, vector<8x512xf32> -> vector<8x512xf32>
    %109 = arith.addf %106, %108 : vector<8x512xf32>
    %110 = vector.extract_strided_slice %109 {offsets = [0, 0], sizes = [8, 128], strides = [1, 1]} : vector<8x512xf32> to vector<8x128xf32>
    %111 = arith.negf %110 : vector<8x128xf32>
    %112 = math.exp %111 : vector<8x128xf32>
    %cst_40 = arith.constant 1.000000e+00 : f32
    %113 = vector.broadcast %cst_40 : f32 to vector<8x128xf32>
    %114 = arith.addf %113, %112 : vector<8x128xf32>
    %115 = arith.divf %113, %114 : vector<8x128xf32>
    %116 = vector.extract_strided_slice %109 {offsets = [0, 128], sizes = [8, 128], strides = [1, 1]} : vector<8x512xf32> to vector<8x128xf32>
    %117 = arith.negf %116 : vector<8x128xf32>
    %118 = math.exp %117 : vector<8x128xf32>
    %cst_41 = arith.constant 1.000000e+00 : f32
    %119 = vector.broadcast %cst_41 : f32 to vector<8x128xf32>
    %120 = arith.addf %119, %118 : vector<8x128xf32>
    %121 = arith.divf %119, %120 : vector<8x128xf32>
    %122 = vector.extract_strided_slice %109 {offsets = [0, 256], sizes = [8, 128], strides = [1, 1]} : vector<8x512xf32> to vector<8x128xf32>
    %123 = math.tanh %122 : vector<8x128xf32>
    %124 = vector.extract_strided_slice %109 {offsets = [0, 384], sizes = [8, 128], strides = [1, 1]} : vector<8x512xf32> to vector<8x128xf32>
    %125 = arith.negf %124 : vector<8x128xf32>
    %126 = math.exp %125 : vector<8x128xf32>
    %cst_42 = arith.constant 1.000000e+00 : f32
    %127 = vector.broadcast %cst_42 : f32 to vector<8x128xf32>
    %128 = arith.addf %127, %126 : vector<8x128xf32>
    %129 = arith.divf %127, %128 : vector<8x128xf32>
    %130 = arith.mulf %121, %101 : vector<8x128xf32>
    %131 = arith.mulf %115, %123 : vector<8x128xf32>
    %132 = arith.addf %130, %131 : vector<8x128xf32>
    %133 = math.tanh %132 : vector<8x128xf32>
    %134 = arith.mulf %129, %133 : vector<8x128xf32>
    %c4_i32 = arith.constant 4 : i32
    %135 = arith.index_cast %c4_i32 : i32 to index
    %c0_43 = arith.constant 0 : index
    %c0_44 = arith.constant 0 : index
    %136 = vector.load %arg8[%135, %c0_43, %c0_44] : memref<8x8x512xf32, #tpu.memory_space<vmem>>, vector<1x8x512xf32>
    %137 = vector.shape_cast %136 : vector<1x8x512xf32> to vector<8x512xf32>
    %c0_45 = arith.constant 0 : index
    %c0_46 = arith.constant 0 : index
    %138 = vector.load %arg3[%c0_45, %c0_46] : memref<128x512xf32, #tpu.memory_space<vmem>>, vector<128x512xf32>
    %cst_47 = arith.constant dense<0.000000e+00> : vector<8x512xf32>
    %139 = tpu.matmul %134, %138, %cst_47 {dimension_numbers = #tpu.dot_dimension_numbers<[1], [0], [0], [1], [0, 0, 1, 1], [], []>} : vector<8x128xf32>, vector<128x512xf32>, vector<8x512xf32> -> vector<8x512xf32>
    %140 = arith.addf %137, %139 : vector<8x512xf32>
    %141 = vector.extract_strided_slice %140 {offsets = [0, 0], sizes = [8, 128], strides = [1, 1]} : vector<8x512xf32> to vector<8x128xf32>
    %142 = arith.negf %141 : vector<8x128xf32>
    %143 = math.exp %142 : vector<8x128xf32>
    %cst_48 = arith.constant 1.000000e+00 : f32
    %144 = vector.broadcast %cst_48 : f32 to vector<8x128xf32>
    %145 = arith.addf %144, %143 : vector<8x128xf32>
    %146 = arith.divf %144, %145 : vector<8x128xf32>
    %147 = vector.extract_strided_slice %140 {offsets = [0, 128], sizes = [8, 128], strides = [1, 1]} : vector<8x512xf32> to vector<8x128xf32>
    %148 = arith.negf %147 : vector<8x128xf32>
    %149 = math.exp %148 : vector<8x128xf32>
    %cst_49 = arith.constant 1.000000e+00 : f32
    %150 = vector.broadcast %cst_49 : f32 to vector<8x128xf32>
    %151 = arith.addf %150, %149 : vector<8x128xf32>
    %152 = arith.divf %150, %151 : vector<8x128xf32>
    %153 = vector.extract_strided_slice %140 {offsets = [0, 256], sizes = [8, 128], strides = [1, 1]} : vector<8x512xf32> to vector<8x128xf32>
    %154 = math.tanh %153 : vector<8x128xf32>
    %155 = vector.extract_strided_slice %140 {offsets = [0, 384], sizes = [8, 128], strides = [1, 1]} : vector<8x512xf32> to vector<8x128xf32>
    %156 = arith.negf %155 : vector<8x128xf32>
    %157 = math.exp %156 : vector<8x128xf32>
    %cst_50 = arith.constant 1.000000e+00 : f32
    %158 = vector.broadcast %cst_50 : f32 to vector<8x128xf32>
    %159 = arith.addf %158, %157 : vector<8x128xf32>
    %160 = arith.divf %158, %159 : vector<8x128xf32>
    %161 = arith.mulf %152, %132 : vector<8x128xf32>
    %162 = arith.mulf %146, %154 : vector<8x128xf32>
    %163 = arith.addf %161, %162 : vector<8x128xf32>
    %164 = math.tanh %163 : vector<8x128xf32>
    %165 = arith.mulf %160, %164 : vector<8x128xf32>
    %c5_i32 = arith.constant 5 : i32
    %166 = arith.index_cast %c5_i32 : i32 to index
    %c0_51 = arith.constant 0 : index
    %c0_52 = arith.constant 0 : index
    %167 = vector.load %arg8[%166, %c0_51, %c0_52] : memref<8x8x512xf32, #tpu.memory_space<vmem>>, vector<1x8x512xf32>
    %168 = vector.shape_cast %167 : vector<1x8x512xf32> to vector<8x512xf32>
    %c0_53 = arith.constant 0 : index
    %c0_54 = arith.constant 0 : index
    %169 = vector.load %arg3[%c0_53, %c0_54] : memref<128x512xf32, #tpu.memory_space<vmem>>, vector<128x512xf32>
    %cst_55 = arith.constant dense<0.000000e+00> : vector<8x512xf32>
    %170 = tpu.matmul %165, %169, %cst_55 {dimension_numbers = #tpu.dot_dimension_numbers<[1], [0], [0], [1], [0, 0, 1, 1], [], []>} : vector<8x128xf32>, vector<128x512xf32>, vector<8x512xf32> -> vector<8x512xf32>
    %171 = arith.addf %168, %170 : vector<8x512xf32>
    %172 = vector.extract_strided_slice %171 {offsets = [0, 0], sizes = [8, 128], strides = [1, 1]} : vector<8x512xf32> to vector<8x128xf32>
    %173 = arith.negf %172 : vector<8x128xf32>
    %174 = math.exp %173 : vector<8x128xf32>
    %cst_56 = arith.constant 1.000000e+00 : f32
    %175 = vector.broadcast %cst_56 : f32 to vector<8x128xf32>
    %176 = arith.addf %175, %174 : vector<8x128xf32>
    %177 = arith.divf %175, %176 : vector<8x128xf32>
    %178 = vector.extract_strided_slice %171 {offsets = [0, 128], sizes = [8, 128], strides = [1, 1]} : vector<8x512xf32> to vector<8x128xf32>
    %179 = arith.negf %178 : vector<8x128xf32>
    %180 = math.exp %179 : vector<8x128xf32>
    %cst_57 = arith.constant 1.000000e+00 : f32
    %181 = vector.broadcast %cst_57 : f32 to vector<8x128xf32>
    %182 = arith.addf %181, %180 : vector<8x128xf32>
    %183 = arith.divf %181, %182 : vector<8x128xf32>
    %184 = vector.extract_strided_slice %171 {offsets = [0, 256], sizes = [8, 128], strides = [1, 1]} : vector<8x512xf32> to vector<8x128xf32>
    %185 = math.tanh %184 : vector<8x128xf32>
    %186 = vector.extract_strided_slice %171 {offsets = [0, 384], sizes = [8, 128], strides = [1, 1]} : vector<8x512xf32> to vector<8x128xf32>
    %187 = arith.negf %186 : vector<8x128xf32>
    %188 = math.exp %187 : vector<8x128xf32>
    %cst_58 = arith.constant 1.000000e+00 : f32
    %189 = vector.broadcast %cst_58 : f32 to vector<8x128xf32>
    %190 = arith.addf %189, %188 : vector<8x128xf32>
    %191 = arith.divf %189, %190 : vector<8x128xf32>
    %192 = arith.mulf %183, %163 : vector<8x128xf32>
    %193 = arith.mulf %177, %185 : vector<8x128xf32>
    %194 = arith.addf %192, %193 : vector<8x128xf32>
    %195 = math.tanh %194 : vector<8x128xf32>
    %196 = arith.mulf %191, %195 : vector<8x128xf32>
    %c6_i32 = arith.constant 6 : i32
    %197 = arith.index_cast %c6_i32 : i32 to index
    %c0_59 = arith.constant 0 : index
    %c0_60 = arith.constant 0 : index
    %198 = vector.load %arg8[%197, %c0_59, %c0_60] : memref<8x8x512xf32, #tpu.memory_space<vmem>>, vector<1x8x512xf32>
    %199 = vector.shape_cast %198 : vector<1x8x512xf32> to vector<8x512xf32>
    %c0_61 = arith.constant 0 : index
    %c0_62 = arith.constant 0 : index
    %200 = vector.load %arg3[%c0_61, %c0_62] : memref<128x512xf32, #tpu.memory_space<vmem>>, vector<128x512xf32>
    %cst_63 = arith.constant dense<0.000000e+00> : vector<8x512xf32>
    %201 = tpu.matmul %196, %200, %cst_63 {dimension_numbers = #tpu.dot_dimension_numbers<[1], [0], [0], [1], [0, 0, 1, 1], [], []>} : vector<8x128xf32>, vector<128x512xf32>, vector<8x512xf32> -> vector<8x512xf32>
    %202 = arith.addf %199, %201 : vector<8x512xf32>
    %203 = vector.extract_strided_slice %202 {offsets = [0, 0], sizes = [8, 128], strides = [1, 1]} : vector<8x512xf32> to vector<8x128xf32>
    %204 = arith.negf %203 : vector<8x128xf32>
    %205 = math.exp %204 : vector<8x128xf32>
    %cst_64 = arith.constant 1.000000e+00 : f32
    %206 = vector.broadcast %cst_64 : f32 to vector<8x128xf32>
    %207 = arith.addf %206, %205 : vector<8x128xf32>
    %208 = arith.divf %206, %207 : vector<8x128xf32>
    %209 = vector.extract_strided_slice %202 {offsets = [0, 128], sizes = [8, 128], strides = [1, 1]} : vector<8x512xf32> to vector<8x128xf32>
    %210 = arith.negf %209 : vector<8x128xf32>
    %211 = math.exp %210 : vector<8x128xf32>
    %cst_65 = arith.constant 1.000000e+00 : f32
    %212 = vector.broadcast %cst_65 : f32 to vector<8x128xf32>
    %213 = arith.addf %212, %211 : vector<8x128xf32>
    %214 = arith.divf %212, %213 : vector<8x128xf32>
    %215 = vector.extract_strided_slice %202 {offsets = [0, 256], sizes = [8, 128], strides = [1, 1]} : vector<8x512xf32> to vector<8x128xf32>
    %216 = math.tanh %215 : vector<8x128xf32>
    %217 = vector.extract_strided_slice %202 {offsets = [0, 384], sizes = [8, 128], strides = [1, 1]} : vector<8x512xf32> to vector<8x128xf32>
    %218 = arith.negf %217 : vector<8x128xf32>
    %219 = math.exp %218 : vector<8x128xf32>
    %cst_66 = arith.constant 1.000000e+00 : f32
    %220 = vector.broadcast %cst_66 : f32 to vector<8x128xf32>
    %221 = arith.addf %220, %219 : vector<8x128xf32>
    %222 = arith.divf %220, %221 : vector<8x128xf32>
    %223 = arith.mulf %214, %194 : vector<8x128xf32>
    %224 = arith.mulf %208, %216 : vector<8x128xf32>
    %225 = arith.addf %223, %224 : vector<8x128xf32>
    %226 = math.tanh %225 : vector<8x128xf32>
    %227 = arith.mulf %222, %226 : vector<8x128xf32>
    %c7_i32 = arith.constant 7 : i32
    %228 = arith.index_cast %c7_i32 : i32 to index
    %c0_67 = arith.constant 0 : index
    %c0_68 = arith.constant 0 : index
    %229 = vector.load %arg8[%228, %c0_67, %c0_68] : memref<8x8x512xf32, #tpu.memory_space<vmem>>, vector<1x8x512xf32>
    %230 = vector.shape_cast %229 : vector<1x8x512xf32> to vector<8x512xf32>
    %c0_69 = arith.constant 0 : index
    %c0_70 = arith.constant 0 : index
    %231 = vector.load %arg3[%c0_69, %c0_70] : memref<128x512xf32, #tpu.memory_space<vmem>>, vector<128x512xf32>
    %cst_71 = arith.constant dense<0.000000e+00> : vector<8x512xf32>
    %232 = tpu.matmul %227, %231, %cst_71 {dimension_numbers = #tpu.dot_dimension_numbers<[1], [0], [0], [1], [0, 0, 1, 1], [], []>} : vector<8x128xf32>, vector<128x512xf32>, vector<8x512xf32> -> vector<8x512xf32>
    %233 = arith.addf %230, %232 : vector<8x512xf32>
    %234 = vector.extract_strided_slice %233 {offsets = [0, 0], sizes = [8, 128], strides = [1, 1]} : vector<8x512xf32> to vector<8x128xf32>
    %235 = arith.negf %234 : vector<8x128xf32>
    %236 = math.exp %235 : vector<8x128xf32>
    %cst_72 = arith.constant 1.000000e+00 : f32
    %237 = vector.broadcast %cst_72 : f32 to vector<8x128xf32>
    %238 = arith.addf %237, %236 : vector<8x128xf32>
    %239 = arith.divf %237, %238 : vector<8x128xf32>
    %240 = vector.extract_strided_slice %233 {offsets = [0, 128], sizes = [8, 128], strides = [1, 1]} : vector<8x512xf32> to vector<8x128xf32>
    %241 = arith.negf %240 : vector<8x128xf32>
    %242 = math.exp %241 : vector<8x128xf32>
    %cst_73 = arith.constant 1.000000e+00 : f32
    %243 = vector.broadcast %cst_73 : f32 to vector<8x128xf32>
    %244 = arith.addf %243, %242 : vector<8x128xf32>
    %245 = arith.divf %243, %244 : vector<8x128xf32>
    %246 = vector.extract_strided_slice %233 {offsets = [0, 256], sizes = [8, 128], strides = [1, 1]} : vector<8x512xf32> to vector<8x128xf32>
    %247 = math.tanh %246 : vector<8x128xf32>
    %248 = vector.extract_strided_slice %233 {offsets = [0, 384], sizes = [8, 128], strides = [1, 1]} : vector<8x512xf32> to vector<8x128xf32>
    %249 = arith.negf %248 : vector<8x128xf32>
    %250 = math.exp %249 : vector<8x128xf32>
    %cst_74 = arith.constant 1.000000e+00 : f32
    %251 = vector.broadcast %cst_74 : f32 to vector<8x128xf32>
    %252 = arith.addf %251, %250 : vector<8x128xf32>
    %253 = arith.divf %251, %252 : vector<8x128xf32>
    %254 = arith.mulf %245, %225 : vector<8x128xf32>
    %255 = arith.mulf %239, %247 : vector<8x128xf32>
    %256 = arith.addf %254, %255 : vector<8x128xf32>
    %257 = math.tanh %256 : vector<8x128xf32>
    %258 = arith.mulf %253, %257 : vector<8x128xf32>
    %c8_i32 = arith.constant 8 : i32
    %c0_75 = arith.constant 0 : index
    %c0_76 = arith.constant 0 : index
    %259 = vector.load %arg5[%c0_75, %c0_76] : memref<128x1xf32, #tpu.memory_space<vmem>>, vector<128x1xf32>
    %cst_77 = arith.constant dense<0.000000e+00> : vector<8x1xf32>
    %260 = tpu.matmul %258, %259, %cst_77 {dimension_numbers = #tpu.dot_dimension_numbers<[1], [0], [0], [1], [0, 0, 1, 1], [], []>} : vector<8x128xf32>, vector<128x1xf32>, vector<8x1xf32> -> vector<8x1xf32>
    %c0_78 = arith.constant 0 : index
    %c0_79 = arith.constant 0 : index
    %261 = vector.load %arg6[%c0_78, %c0_79] : memref<1x1xf32, #tpu.memory_space<vmem>>, vector<1x1xf32>
    %262 = vector.broadcast %261 : vector<1x1xf32> to vector<8x1xf32>
    %263 = arith.addf %260, %262 : vector<8x1xf32>
    %264 = arith.negf %263 : vector<8x1xf32>
    %265 = math.exp %264 : vector<8x1xf32>
    %cst_80 = arith.constant 1.000000e+00 : f32
    %266 = vector.broadcast %cst_80 : f32 to vector<8x1xf32>
    %267 = arith.addf %266, %265 : vector<8x1xf32>
    %268 = arith.divf %266, %267 : vector<8x1xf32>
    %c0_81 = arith.constant 0 : index
    %c0_82 = arith.constant 0 : index
    %269 = vector.load %arg7[%c0_81, %c0_82] : memref<8x1xf32, #tpu.memory_space<vmem>>, vector<8x1xf32>
    tpu.vector_store %arg7[%c0_81, %c0_82], %268 {strides = array<i32>} : memref<8x1xf32, #tpu.memory_space<vmem>>, vector<8x1xf32>,
    return
  }
  func.func @transform_0(%arg0: i32) -> (i32, i32, i32) {
    %c0_i32 = arith.constant 0 : i32
    %c0_i32_0 = arith.constant 0 : i32
    %c0_i32_1 = arith.constant 0 : i32
    return %c0_i32, %arg0, %c0_i32_0 : i32, i32, i32
  }
  func.func @transform_1(%arg0: i32) -> (i32, i32) {
    %c0_i32 = arith.constant 0 : i32
    %c0_i32_0 = arith.constant 0 : i32
    %c0_i32_1 = arith.constant 0 : i32
    return %c0_i32, %c0_i32_0 : i32, i32
  }
  func.func @transform_2(%arg0: i32) -> (i32, i32) {
    %c0_i32 = arith.constant 0 : i32
    %c0_i32_0 = arith.constant 0 : i32
    %c0_i32_1 = arith.constant 0 : i32
    return %c0_i32, %c0_i32_0 : i32, i32
  }
  func.func @transform_3(%arg0: i32) -> (i32, i32) {
    %c0_i32 = arith.constant 0 : i32
    %c0_i32_0 = arith.constant 0 : i32
    %c0_i32_1 = arith.constant 0 : i32
    return %c0_i32, %c0_i32_0 : i32, i32
  }
  func.func @transform_4(%arg0: i32) -> (i32, i32) {
    %c0_i32 = arith.constant 0 : i32
    %c0_i32_0 = arith.constant 0 : i32
    %c0_i32_1 = arith.constant 0 : i32
    return %c0_i32, %c0_i32_0 : i32, i32
  }
  func.func @transform_5(%arg0: i32) -> (i32, i32) {
    %c0_i32 = arith.constant 0 : i32
    %c0_i32_0 = arith.constant 0 : i32
    %c0_i32_1 = arith.constant 0 : i32
    return %c0_i32, %c0_i32_0 : i32, i32
  }
  func.func @transform_6(%arg0: i32) -> (i32, i32) {
    %c0_i32 = arith.constant 0 : i32
    %c0_i32_0 = arith.constant 0 : i32
    return %arg0, %c0_i32 : i32, i32
  }
}

</mosaic_0001>

<llo_original>
// kernel: tpu_custom_call.1
$region0: #{tpu_custom_call.1}
  #allocation0 [shape = 'u32[]', space=smem, size = 0x4, offset = 0x4, fixed_abs, tag = 'smem constant byte address 0x4 - core index']
  #allocation1 [shape = 'u32[144,128]{1,0:T(1,128)}', space=vmem, size = 0x12000, scoped, tag = 'internal scratch']
  #allocation2 [shape = 'f32[8,8,512]{2,1,0:T(8,128)}', space=vmem, size = 0x20000, scoped, tag = 'scratch operand']
  #allocation3 [shape = 'f32[1,1]{1,0:T(1,128)S(1)}', space=vmem, size = 0x200, scoped, tag = 'scoped memory for tpu_custom_call.1']
  %s0 = inlined_call_operand.vmem [shape: f32[8,8,16], index: 0, kind: input, shape index: {}]
  %s1 = inlined_call_operand.vmem [shape: f32[16,512], index: 1, kind: input, shape index: {}]
  %s2 = inlined_call_operand.hbm [shape: f32[128,512], index: 2, kind: input, shape index: {}]
  %s3 = inlined_call_operand.vmem [shape: f32[1,512], index: 3, kind: input, shape index: {}]
  %s4 = inlined_call_operand.vmem [shape: f32[128,1], index: 4, kind: input, shape index: {}]
  %s5 = inlined_call_operand.<no memory space> [shape: f32[1,1], index: 5, kind: input, shape index: {}]
  %s6 = inlined_call_operand.vmem [shape: f32[8,1], index: 6, kind: output, shape index: {}]
  %s7 = sld [smem:[#allocation0]]
  $region38: #{tpu_custom_call.1} parent=0
    _
  %s9 = ssub.s32 1, %s7
  %s10 = scalar_select 0, %s9, %s7
  %v11 = vstv %s5
  %12 = vst [vmem:[#allocation3] sm:$0x1] %v11
  $region1: #{tpu_custom_call.1} parent=0
    #allocation4 [shape = 'u8[262144]{0}', space=vmem, size = 0x40000, scoped, tag = 'input window, operand 2, single buffered']
    #allocation5 [shape = 's32[1]{0}', space=sflag, size = 0x4, scoped, tag = 'scoped memory for tpu_custom_call.1']
    %13 = vsyncpa [#allocation5], 0
    // Predicated region
    $region2: #{tpu_custom_call.1} parent=1 // pred_check
      _
    $region3: #{tpu_custom_call.1} parent=1 // pred_check_branch
      %15 = sbr.rel (0) target = $region5
    $region4: #{tpu_custom_call.1} parent=1 // pred_region
      _
    $region5: #{tpu_custom_call.1} parent=1 // pred_fallthru
      _
    // Predicated region
    $region6: #{tpu_custom_call.1} parent=1 // pred_check
      _
    $region7: #{tpu_custom_call.1} parent=1 // pred_check_branch
      %17 = sbr.rel (0) target = $region9
    $region8: #{tpu_custom_call.1} parent=1 // pred_region
      _
    $region9: #{tpu_custom_call.1} parent=1 // pred_fallthru
      _
    // Predicated region
    $region10: #{tpu_custom_call.1} parent=1 // pred_check
      _
    $region11: #{tpu_custom_call.1} parent=1 // pred_check_branch
      %19 = sbr.rel (0) target = $region13
    $region12: #{tpu_custom_call.1} parent=1 // pred_region
      %s21 = ssub.s32 8192, 8192
      %22 = vsyncadd [#allocation5], %s21
      %s23 = sshll.u32 [#allocation4], 4
      %s24 = int_to_ptr.vmem [resolvable:$true] %s23
      %29 = dma.hbm_to_vmem [thread:$0]  %s2, 8192, %s24, [#allocation5], 512, 512, 32
    $region13: #{tpu_custom_call.1} parent=1 // pred_fallthru
      _
    // Predicated region
    $region14: #{tpu_custom_call.1} parent=1 // pred_check
      _
    $region15: #{tpu_custom_call.1} parent=1 // pred_check_branch
      %31 = sbr.rel (0) target = $region17
    $region16: #{tpu_custom_call.1} parent=1 // pred_region
      _
    $region17: #{tpu_custom_call.1} parent=1 // pred_fallthru
      _
    // Predicated region
    $region18: #{tpu_custom_call.1} parent=1 // pred_check
      _
    $region19: #{tpu_custom_call.1} parent=1 // pred_check_branch
      %33 = sbr.rel (0) target = $region21
    $region20: #{tpu_custom_call.1} parent=1 // pred_region
      _
    $region21: #{tpu_custom_call.1} parent=1 // pred_fallthru
      _
    // Predicated region
    $region22: #{tpu_custom_call.1} parent=1 // pred_check
      _
    $region23: #{tpu_custom_call.1} parent=1 // pred_check_branch
      %35 = sbr.rel (0) target = $region25
    $region24: #{tpu_custom_call.1} parent=1 // pred_region
      _
    $region25: #{tpu_custom_call.1} parent=1 // pred_fallthru
      _
    // Predicated region
    $region26: #{tpu_custom_call.1} parent=1 // pred_check
      _
    $region27: #{tpu_custom_call.1} parent=1 // pred_check_branch
      %37 = sbr.rel (0) target = $region29
    $region28: #{tpu_custom_call.1} parent=1 // pred_region
      %38 = dma.done [#allocation5], 8192
    $region29: #{tpu_custom_call.1} parent=1 // pred_fallthru
      _
    %v39 = vld [vmem:[%s0] sm:$0xff]
    %v40 = vld [vmem:[%s0 + $0x8] sm:$0xff]
    %v41 = vld [vmem:[%s0 + $0x10] sm:$0xff]
    %v42 = vld [vmem:[%s0 + $0x18] sm:$0xff]
    %v43 = vld [vmem:[%s0 + $0x20] sm:$0xff]
    %v44 = vld [vmem:[%s0 + $0x28] sm:$0xff]
    %v45 = vld [vmem:[%s0 + $0x30] sm:$0xff]
    %v46 = vld [vmem:[%s0 + $0x38] sm:$0xff]
    %v47 = vld [vmem:[%s1] sm:$0xff]
    %v48 = vld [vmem:[%s1 + $0x8] sm:$0xff]
    %v49 = vld [vmem:[%s1 + $0x10] sm:$0xff]
    %v50 = vld [vmem:[%s1 + $0x18] sm:$0xff]
    %v51 = vld [vmem:[%s1 + $0x20] sm:$0xff]
    %v52 = vld [vmem:[%s1 + $0x28] sm:$0xff]
    %v53 = vld [vmem:[%s1 + $0x30] sm:$0xff]
    %v54 = vld [vmem:[%s1 + $0x38] sm:$0xff]
    %v55 = vld [vmem:[%s3] sm:$0xf]
    %v57 = vlaneseq
    %v58 = vshrl.u32 %v57, 7
    %v59 = vsub.s32 0, %v58
    %v60 = vrot.slane %v55, %v59
    %v61 = vlaneseq
    %v62 = vshrl.u32 %v61, 7
    %v63 = vsub.s32 1, %v62
    %v64 = vrot.slane %v55, %v63
    %v65 = vlaneseq
    %v66 = vshrl.u32 %v65, 7
    %v67 = vsub.s32 2, %v66
    %v68 = vrot.slane %v55, %v67
    %v69 = vlaneseq
    %v70 = vshrl.u32 %v69, 7
    %v71 = vsub.s32 3, %v70
    %v72 = vrot.slane %v55, %v71
    %vm77 = vcmask 130048
    %v79 = vsel %vm77, %v39, 0
    %v82 = vsel %vm77, %v40, 0
    %v85 = vsel %vm77, %v41, 0
    %v88 = vsel %vm77, %v42, 0
    %v91 = vsel %vm77, %v43, 0
    %v94 = vsel %vm77, %v44, 0
    %v97 = vsel %vm77, %v45, 0
    %v100 = vsel %vm77, %v46, 0
    %102 = vmatprep.subr.mxu0 %v48
    %103 = vmatpush1.msra.mxu0 %v47
    %104 = vmatprep.subr.mxu0 %v52
    %105 = vmatpush1.msra.mxu0 %v51
    %106 = vmatprep.subr.mxu0 0.0
    %107 = vmatpush1.msra.mxu0 0.0
    %108 = vmatprep.subr.mxu0 0.0
    %109 = vmatpush1.msra.mxu0 0.0
    %110 = vmatprep.subr.mxu0 0.0
    %111 = vmatpush1.msra.mxu0 0.0
    %112 = vmatprep.subr.mxu0 0.0
    %113 = vmatpush1.msra.mxu0 0.0
    %114 = vmatprep.subr.mxu0 0.0
    %115 = vmatpush1.msra.mxu0 0.0
    %116 = vmatprep.subr.mxu0 0.0
    %117 = vmatpush1.msra.mxu0 0.0
    %118 = vmatprep.subr.mxu0 0.0
    %119 = vmatpush1.msra.mxu0 0.0
    %120 = vmatprep.subr.mxu0 0.0
    %121 = vmatpush1.msra.mxu0 0.0
    %122 = vmatprep.subr.mxu0 0.0
    %123 = vmatpush1.msra.mxu0 0.0
    %124 = vmatprep.subr.mxu0 0.0
    %125 = vmatpush1.msra.mxu0 0.0
    %126 = vmatprep.subr.mxu0 0.0
    %127 = vmatpush1.msra.mxu0 0.0
    %128 = vmatprep.subr.mxu0 0.0
    %129 = vmatpush1.msra.mxu0 0.0
    %130 = vmatprep.subr.mxu0 0.0
    %131 = vmatpush1.msra.mxu0 0.0
    %132 = vmatprep.subr.mxu0 0.0
    %133 = vmatpush1.msra.mxu0 0.0
    %134 = vmatprep.subr.mxu0 0.0
    %135 = vmatpush1.msra.mxu0 0.0
    %136 = vmatprep.subr.mxu0 0.0
    %137 = vmatpush1.msra.mxu0 0.0
    %138 = vmatprep.subr.mxu0 0.0
    %139 = vmatpush1.msra.mxu0 0.0
    %140 = vmatprep.subr.mxu0 0.0
    %141 = vmatpush1.msra.mxu0 0.0
    %142 = vmatprep.subr.mxu0 0.0
    %143 = vmatpush1.msra.mxu0 0.0
    %144 = vmatprep.subr.mxu0 0.0
    %145 = vmatpush1.msra.mxu0 0.0
    %146 = vmatprep.subr.mxu0 0.0
    %147 = vmatpush1.msra.mxu0 0.0
    %148 = vmatprep.subr.mxu0 0.0
    %149 = vmatpush1.msra.mxu0 0.0
    %150 = vmatprep.subr.mxu0 0.0
    %151 = vmatpush1.msra.mxu0 0.0
    %152 = vmatprep.subr.mxu0 0.0
    %153 = vmatpush1.msra.mxu0 0.0
    %154 = vmatprep.subr.mxu0 0.0
    %155 = vmatpush1.msra.mxu0 0.0
    %156 = vmatprep.subr.mxu0 0.0
    %157 = vmatpush1.msra.mxu0 0.0
    %158 = vmatprep.subr.mxu0 0.0
    %159 = vmatpush1.msra.mxu0 0.0
    %160 = vmatprep.subr.mxu0 0.0
    %161 = vmatpush1.msra.mxu0 0.0
    %162 = vmatprep.subr.mxu0 0.0
    %163 = vmatpush1.msra.mxu0 0.0
    %164 = vmatprep.subr.mxu0 0.0
    %165 = vmatpush1.msra.mxu0 0.0
    %166 = vmatprep.mubr.f32.mxu0 0.0
    %167 = vmatmul.mubr.f32.gmra.mrb[0].mxu0 %v79
    %v168 = vpop.f32.mrb[0].mxu0
    %v169 = vadd.f32 %v60, %v168
    %v170 = vpop.f32.mrb[0].mxu0
    %v171 = vadd.f32 %v64, %v170
    %172 = vmatprep.mubr.f32.mxu0 0.0
    %173 = vmatmul.mubr.f32.gmra.mrb[0].mxu0 %v82
    %v174 = vpop.f32.mrb[0].mxu0
    %v175 = vadd.f32 %v60, %v174
    %v176 = vpop.f32.mrb[0].mxu0
    %v177 = vadd.f32 %v64, %v176
    %178 = vmatprep.mubr.f32.mxu0 0.0
    %179 = vmatmul.mubr.f32.gmra.mrb[0].mxu0 %v85
    %v180 = vpop.f32.mrb[0].mxu0
    %v181 = vadd.f32 %v60, %v180
    %v182 = vpop.f32.mrb[0].mxu0
    %v183 = vadd.f32 %v64, %v182
    %184 = vmatprep.mubr.f32.mxu0 0.0
    %185 = vmatmul.mubr.f32.gmra.mrb[0].mxu0 %v88
    %v186 = vpop.f32.mrb[0].mxu0
    %v187 = vadd.f32 %v60, %v186
    %v188 = vpop.f32.mrb[0].mxu0
    %v189 = vadd.f32 %v64, %v188
    %190 = vmatprep.mubr.f32.mxu0 0.0
    %191 = vmatmul.mubr.f32.gmra.mrb[0].mxu0 %v91
    %v192 = vpop.f32.mrb[0].mxu0
    %v193 = vadd.f32 %v60, %v192
    %v194 = vpop.f32.mrb[0].mxu0
    %v195 = vadd.f32 %v64, %v194
    %196 = vmatprep.mubr.f32.mxu0 0.0
    %197 = vmatmul.mubr.f32.gmra.mrb[0].mxu0 %v94
    %v198 = vpop.f32.mrb[0].mxu0
    %v199 = vadd.f32 %v60, %v198
    %v200 = vpop.f32.mrb[0].mxu0
    %v201 = vadd.f32 %v64, %v200
    %202 = vmatprep.mubr.f32.mxu0 0.0
    %203 = vmatmul.mubr.f32.gmra.mrb[0].mxu0 %v97
    %v204 = vpop.f32.mrb[0].mxu0
    %v205 = vadd.f32 %v60, %v204
    %v206 = vpop.f32.mrb[0].mxu0
    %v207 = vadd.f32 %v64, %v206
    %208 = vmatprep.mubr.f32.mxu0 0.0
    %209 = vmatmul.mubr.f32.gmra.mrb[0].mxu0 %v100
    %v210 = vpop.f32.mrb[0].mxu0
    %v211 = vadd.f32 %v60, %v210
    %v212 = vpop.f32.mrb[0].mxu0
    %v213 = vadd.f32 %v64, %v212
    %214 = vdwg.mxu0
    %215 = vmatprep.subr.mxu0 %v50
    %216 = vmatpush1.msra.mxu0 %v49
    %217 = vmatprep.subr.mxu0 %v54
    %218 = vmatpush1.msra.mxu0 %v53
    %219 = vmatprep.subr.mxu0 0.0
    %220 = vmatpush1.msra.mxu0 0.0
    %221 = vmatprep.subr.mxu0 0.0
    %222 = vmatpush1.msra.mxu0 0.0
    %223 = vmatprep.subr.mxu0 0.0
    %224 = vmatpush1.msra.mxu0 0.0
    %225 = vmatprep.subr.mxu0 0.0
    %226 = vmatpush1.msra.mxu0 0.0
    %227 = vmatprep.subr.mxu0 0.0
    %228 = vmatpush1.msra.mxu0 0.0
    %229 = vmatprep.subr.mxu0 0.0
    %230 = vmatpush1.msra.mxu0 0.0
    %231 = vmatprep.subr.mxu0 0.0
    %232 = vmatpush1.msra.mxu0 0.0
    %233 = vmatprep.subr.mxu0 0.0
    %234 = vmatpush1.msra.mxu0 0.0
    %235 = vmatprep.subr.mxu0 0.0
    %236 = vmatpush1.msra.mxu0 0.0
    %237 = vmatprep.subr.mxu0 0.0
    %238 = vmatpush1.msra.mxu0 0.0
    %239 = vmatprep.subr.mxu0 0.0
    %240 = vmatpush1.msra.mxu0 0.0
    %241 = vmatprep.subr.mxu0 0.0
    %242 = vmatpush1.msra.mxu0 0.0
    %243 = vmatprep.subr.mxu0 0.0
    %244 = vmatpush1.msra.mxu0 0.0
    %245 = vmatprep.subr.mxu0 0.0
    %246 = vmatpush1.msra.mxu0 0.0
    %247 = vmatprep.subr.mxu0 0.0
    %248 = vmatpush1.msra.mxu0 0.0
    %249 = vmatprep.subr.mxu0 0.0
    %250 = vmatpush1.msra.mxu0 0.0
    %251 = vmatprep.subr.mxu0 0.0
    %252 = vmatpush1.msra.mxu0 0.0
    %253 = vmatprep.subr.mxu0 0.0
    %254 = vmatpush1.msra.mxu0 0.0
    %255 = vmatprep.subr.mxu0 0.0
    %256 = vmatpush1.msra.mxu0 0.0
    %257 = vmatprep.subr.mxu0 0.0
    %258 = vmatpush1.msra.mxu0 0.0
    %259 = vmatprep.subr.mxu0 0.0
    %260 = vmatpush1.msra.mxu0 0.0
    %261 = vmatprep.subr.mxu0 0.0
    %262 = vmatpush1.msra.mxu0 0.0
    %263 = vmatprep.subr.mxu0 0.0
    %264 = vmatpush1.msra.mxu0 0.0
    %265 = vmatprep.subr.mxu0 0.0
    %266 = vmatpush1.msra.mxu0 0.0
    %267 = vmatprep.subr.mxu0 0.0
    %268 = vmatpush1.msra.mxu0 0.0
    %269 = vmatprep.subr.mxu0 0.0
    %270 = vmatpush1.msra.mxu0 0.0
    %271 = vmatprep.subr.mxu0 0.0
    %272 = vmatpush1.msra.mxu0 0.0
    %273 = vmatprep.subr.mxu0 0.0
    %274 = vmatpush1.msra.mxu0 0.0
    %275 = vmatprep.subr.mxu0 0.0
    %276 = vmatpush1.msra.mxu0 0.0
    %277 = vmatprep.subr.mxu0 0.0
    %278 = vmatpush1.msra.mxu0 0.0
    %279 = vmatprep.mubr.f32.mxu0 0.0
    %280 = vmatmul.mubr.f32.gmra.mrb[0].mxu0 %v79
    %v281 = vpop.f32.mrb[0].mxu0
    %v282 = vadd.f32 %v68, %v281
    %v283 = vpop.f32.mrb[0].mxu0
    %v284 = vadd.f32 %v72, %v283
    %285 = vmatprep.mubr.f32.mxu0 0.0
    %286 = vmatmul.mubr.f32.gmra.mrb[0].mxu0 %v82
    %v287 = vpop.f32.mrb[0].mxu0
    %v288 = vadd.f32 %v68, %v287
    %v289 = vpop.f32.mrb[0].mxu0
    %v290 = vadd.f32 %v72, %v289
    %291 = vmatprep.mubr.f32.mxu0 0.0
    %292 = vmatmul.mubr.f32.gmra.mrb[0].mxu0 %v85
    %v293 = vpop.f32.mrb[0].mxu0
    %v294 = vadd.f32 %v68, %v293
    %v295 = vpop.f32.mrb[0].mxu0
    %v296 = vadd.f32 %v72, %v295
    %297 = vmatprep.mubr.f32.mxu0 0.0
    %298 = vmatmul.mubr.f32.gmra.mrb[0].mxu0 %v88
    %v299 = vpop.f32.mrb[0].mxu0
    %v300 = vadd.f32 %v68, %v299
    %v301 = vpop.f32.mrb[0].mxu0
    %v302 = vadd.f32 %v72, %v301
    %303 = vmatprep.mubr.f32.mxu0 0.0
    %304 = vmatmul.mubr.f32.gmra.mrb[0].mxu0 %v91
    %v305 = vpop.f32.mrb[0].mxu0
    %v306 = vadd.f32 %v68, %v305
    %v307 = vpop.f32.mrb[0].mxu0
    %v308 = vadd.f32 %v72, %v307
    %309 = vmatprep.mubr.f32.mxu0 0.0
    %310 = vmatmul.mubr.f32.gmra.mrb[0].mxu0 %v94
    %v311 = vpop.f32.mrb[0].mxu0
    %v312 = vadd.f32 %v68, %v311
    %v313 = vpop.f32.mrb[0].mxu0
    %v314 = vadd.f32 %v72, %v313
    %315 = vmatprep.mubr.f32.mxu0 0.0
    %316 = vmatmul.mubr.f32.gmra.mrb[0].mxu0 %v97
    %v317 = vpop.f32.mrb[0].mxu0
    %v318 = vadd.f32 %v68, %v317
    %v319 = vpop.f32.mrb[0].mxu0
    %v320 = vadd.f32 %v72, %v319
    %321 = vmatprep.mubr.f32.mxu0 0.0
    %322 = vmatmul.mubr.f32.gmra.mrb[0].mxu0 %v100
    %v323 = vpop.f32.mrb[0].mxu0
    %v324 = vadd.f32 %v68, %v323
    %v325 = vpop.f32.mrb[0].mxu0
    %v326 = vadd.f32 %v72, %v325
    %327 = vdwg.mxu0
    %328 = vst [vmem:[#allocation2] sm:$0xff] %v169
    %329 = vst [vmem:[#allocation2 + $0x8] sm:$0xff] %v171
    %330 = vst [vmem:[#allocation2 + $0x10] sm:$0xff] %v282
    %331 = vst [vmem:[#allocation2 + $0x18] sm:$0xff] %v284
    %332 = vst [vmem:[#allocation2 + $0x20] sm:$0xff] %v175
    %333 = vst [vmem:[#allocation2 + $0x28] sm:$0xff] %v177
    %334 = vst [vmem:[#allocation2 + $0x30] sm:$0xff] %v288
    %335 = vst [vmem:[#allocation2 + $0x38] sm:$0xff] %v290
    %336 = vst [vmem:[#allocation2 + $0x40] sm:$0xff] %v181
    %337 = vst [vmem:[#allocation2 + $0x48] sm:$0xff] %v183
    %338 = vst [vmem:[#allocation2 + $0x50] sm:$0xff] %v294
    %339 = vst [vmem:[#allocation2 + $0x58] sm:$0xff] %v296
    %340 = vst [vmem:[#allocation2 + $0x60] sm:$0xff] %v187
    %341 = vst [vmem:[#allocation2 + $0x68] sm:$0xff] %v189
    %342 = vst [vmem:[#allocation2 + $0x70] sm:$0xff] %v300
    %343 = vst [vmem:[#allocation2 + $0x78] sm:$0xff] %v302
    %344 = vst [vmem:[#allocation2 + $0x80] sm:$0xff] %v193
    %345 = vst [vmem:[#allocation2 + $0x88] sm:$0xff] %v195
    %346 = vst [vmem:[#allocation2 + $0x90] sm:$0xff] %v306
    %347 = vst [vmem:[#allocation2 + $0x98] sm:$0xff] %v308
    %348 = vst [vmem:[#allocation2 + $0xa0] sm:$0xff] %v199
    %349 = vst [vmem:[#allocation2 + $0xa8] sm:$0xff] %v201
    %350 = vst [vmem:[#allocation2 + $0xb0] sm:$0xff] %v312
    %351 = vst [vmem:[#allocation2 + $0xb8] sm:$0xff] %v314
    %352 = vst [vmem:[#allocation2 + $0xc0] sm:$0xff] %v205
    %353 = vst [vmem:[#allocation2 + $0xc8] sm:$0xff] %v207
    %354 = vst [vmem:[#allocation2 + $0xd0] sm:$0xff] %v318
    %355 = vst [vmem:[#allocation2 + $0xd8] sm:$0xff] %v320
    %356 = vst [vmem:[#allocation2 + $0xe0] sm:$0xff] %v211
    %357 = vst [vmem:[#allocation2 + $0xe8] sm:$0xff] %v213
    %358 = vst [vmem:[#allocation2 + $0xf0] sm:$0xff] %v324
    %359 = vst [vmem:[#allocation2 + $0xf8] sm:$0xff] %v326
    %v360 = vld [vmem:[#allocation2] sm:$0xff]
    %v361 = vld [vmem:[#allocation2 + $0x8] sm:$0xff]
    %v362 = vld [vmem:[#allocation2 + $0x10] sm:$0xff]
    %v363 = vld [vmem:[#allocation2 + $0x18] sm:$0xff]
    %v364 = vld [vmem:[#allocation4] sm:$0xff]
    %v365 = vld [vmem:[#allocation4 + $0x8] sm:$0xff]
    %v366 = vld [vmem:[#allocation4 + $0x10] sm:$0xff]
    %v367 = vld [vmem:[#allocation4 + $0x18] sm:$0xff]
    %v368 = vld [vmem:[#allocation4 + $0x20] sm:$0xff]
    %v369 = vld [vmem:[#allocation4 + $0x28] sm:$0xff]
    %v370 = vld [vmem:[#allocation4 + $0x30] sm:$0xff]
    %v371 = vld [vmem:[#allocation4 + $0x38] sm:$0xff]
    %v372 = vld [vmem:[#allocation4 + $0x40] sm:$0xff]
    %v373 = vld [vmem:[#allocation4 + $0x48] sm:$0xff]
    %v374 = vld [vmem:[#allocation4 + $0x50] sm:$0xff]
    %v375 = vld [vmem:[#allocation4 + $0x58] sm:$0xff]
    %v376 = vld [vmem:[#allocation4 + $0x60] sm:$0xff]
    %v377 = vld [vmem:[#allocation4 + $0x68] sm:$0xff]
    %v378 = vld [vmem:[#allocation4 + $0x70] sm:$0xff]
    %v379 = vld [vmem:[#allocation4 + $0x78] sm:$0xff]
    %v380 = vld [vmem:[#allocation4 + $0x80] sm:$0xff]
    %v381 = vld [vmem:[#allocation4 + $0x88] sm:$0xff]
    %v382 = vld [vmem:[#allocation4 + $0x90] sm:$0xff]
    %v383 = vld [vmem:[#allocation4 + $0x98] sm:$0xff]
    %v384 = vld [vmem:[#allocation4 + $0xa0] sm:$0xff]
    %v385 = vld [vmem:[#allocation4 + $0xa8] sm:$0xff]
    %v386 = vld [vmem:[#allocation4 + $0xb0] sm:$0xff]
    %v387 = vld [vmem:[#allocation4 + $0xb8] sm:$0xff]
    %v388 = vld [vmem:[#allocation4 + $0xc0] sm:$0xff]
    %v389 = vld [vmem:[#allocation4 + $0xc8] sm:$0xff]
    %v390 = vld [vmem:[#allocation4 + $0xd0] sm:$0xff]
    %v391 = vld [vmem:[#allocation4 + $0xd8] sm:$0xff]
    %v392 = vld [vmem:[#allocation4 + $0xe0] sm:$0xff]
    %v393 = vld [vmem:[#allocation4 + $0xe8] sm:$0xff]
    %v394 = vld [vmem:[#allocation4 + $0xf0] sm:$0xff]
    %v395 = vld [vmem:[#allocation4 + $0xf8] sm:$0xff]
    %v396 = vld [vmem:[#allocation4 + $0x100] sm:$0xff]
    %v397 = vld [vmem:[#allocation4 + $0x108] sm:$0xff]
    %v398 = vld [vmem:[#allocation4 + $0x110] sm:$0xff]
    %v399 = vld [vmem:[#allocation4 + $0x118] sm:$0xff]
    %v400 = vld [vmem:[#allocation4 + $0x120] sm:$0xff]
    %v401 = vld [vmem:[#allocation4 + $0x128] sm:$0xff]
    %v402 = vld [vmem:[#allocation4 + $0x130] sm:$0xff]
    %v403 = vld [vmem:[#allocation4 + $0x138] sm:$0xff]
    %v404 = vld [vmem:[#allocation4 + $0x140] sm:$0xff]
    %v405 = vld [vmem:[#allocation4 + $0x148] sm:$0xff]
    %v406 = vld [vmem:[#allocation4 + $0x150] sm:$0xff]
    %v407 = vld [vmem:[#allocation4 + $0x158] sm:$0xff]
    %v408 = vld [vmem:[#allocation4 + $0x160] sm:$0xff]
    %v409 = vld [vmem:[#allocation4 + $0x168] sm:$0xff]
    %v410 = vld [vmem:[#allocation4 + $0x170] sm:$0xff]
    %v411 = vld [vmem:[#allocation4 + $0x178] sm:$0xff]
    %v412 = vld [vmem:[#allocation4 + $0x180] sm:$0xff]
    %v413 = vld [vmem:[#allocation4 + $0x188] sm:$0xff]
    %v414 = vld [vmem:[#allocation4 + $0x190] sm:$0xff]
    %v415 = vld [vmem:[#allocation4 + $0x198] sm:$0xff]
    %v416 = vld [vmem:[#allocation4 + $0x1a0] sm:$0xff]
    %v417 = vld [vmem:[#allocation4 + $0x1a8] sm:$0xff]
    %v418 = vld [vmem:[#allocation4 + $0x1b0] sm:$0xff]
    %v419 = vld [vmem:[#allocation4 + $0x1b8] sm:$0xff]
    %v420 = vld [vmem:[#allocation4 + $0x1c0] sm:$0xff]
    %v421 = vld [vmem:[#allocation4 + $0x1c8] sm:$0xff]
    %v422 = vld [vmem:[#allocation4 + $0x1d0] sm:$0xff]
    %v423 = vld [vmem:[#allocation4 + $0x1d8] sm:$0xff]
    %v424 = vld [vmem:[#allocation4 + $0x1e0] sm:$0xff]
    %v425 = vld [vmem:[#allocation4 + $0x1e8] sm:$0xff]
    %v426 = vld [vmem:[#allocation4 + $0x1f0] sm:$0xff]
    %v427 = vld [vmem:[#allocation4 + $0x1f8] sm:$0xff]
    %428 = vmatprep.subr.mxu0 %v365
    %429 = vmatpush1.msra.mxu0 %v364
    %430 = vmatprep.subr.mxu0 %v369
    %431 = vmatpush1.msra.mxu0 %v368
    %432 = vmatprep.subr.mxu0 %v373
    %433 = vmatpush1.msra.mxu0 %v372
    %434 = vmatprep.subr.mxu0 %v377
    %435 = vmatpush1.msra.mxu0 %v376
    %436 = vmatprep.subr.mxu0 %v381
    %437 = vmatpush1.msra.mxu0 %v380
    %438 = vmatprep.subr.mxu0 %v385
    %439 = vmatpush1.msra.mxu0 %v384
    %440 = vmatprep.subr.mxu0 %v389
    %441 = vmatpush1.msra.mxu0 %v388
    %442 = vmatprep.subr.mxu0 %v393
    %443 = vmatpush1.msra.mxu0 %v392
    %444 = vmatprep.subr.mxu0 %v397
    %445 = vmatpush1.msra.mxu0 %v396
    %446 = vmatprep.subr.mxu0 %v401
    %447 = vmatpush1.msra.mxu0 %v400
    %448 = vmatprep.subr.mxu0 %v405
    %449 = vmatpush1.msra.mxu0 %v404
    %450 = vmatprep.subr.mxu0 %v409
    %451 = vmatpush1.msra.mxu0 %v408
    %452 = vmatprep.subr.mxu0 %v413
    %453 = vmatpush1.msra.mxu0 %v412
    %454 = vmatprep.subr.mxu0 %v417
    %455 = vmatpush1.msra.mxu0 %v416
    %456 = vmatprep.subr.mxu0 %v421
    %457 = vmatpush1.msra.mxu0 %v420
    %458 = vmatprep.subr.mxu0 %v425
    %459 = vmatpush1.msra.mxu0 %v424
    %460 = vmatprep.subr.mxu0 0.0
    %461 = vmatpush1.msra.mxu0 0.0
    %462 = vmatprep.subr.mxu0 0.0
    %463 = vmatpush1.msra.mxu0 0.0
    %464 = vmatprep.subr.mxu0 0.0
    %465 = vmatpush1.msra.mxu0 0.0
    %466 = vmatprep.subr.mxu0 0.0
    %467 = vmatpush1.msra.mxu0 0.0
    %468 = vmatprep.subr.mxu0 0.0
    %469 = vmatpush1.msra.mxu0 0.0
    %470 = vmatprep.subr.mxu0 0.0
    %471 = vmatpush1.msra.mxu0 0.0
    %472 = vmatprep.subr.mxu0 0.0
    %473 = vmatpush1.msra.mxu0 0.0
    %474 = vmatprep.subr.mxu0 0.0
    %475 = vmatpush1.msra.mxu0 0.0
    %476 = vmatprep.subr.mxu0 0.0
    %477 = vmatpush1.msra.mxu0 0.0
    %478 = vmatprep.subr.mxu0 0.0
    %479 = vmatpush1.msra.mxu0 0.0
    %480 = vmatprep.subr.mxu0 0.0
    %481 = vmatpush1.msra.mxu0 0.0
    %482 = vmatprep.subr.mxu0 0.0
    %483 = vmatpush1.msra.mxu0 0.0
    %484 = vmatprep.subr.mxu0 0.0
    %485 = vmatpush1.msra.mxu0 0.0
    %486 = vmatprep.subr.mxu0 0.0
    %487 = vmatpush1.msra.mxu0 0.0
    %488 = vmatprep.subr.mxu0 0.0
    %489 = vmatpush1.msra.mxu0 0.0
    %490 = vmatprep.subr.mxu0 0.0
    %491 = vmatpush1.msra.mxu0 0.0
    %492 = vmatprep.mubr.f32.mxu0 0.0
    %493 = vmatmul.mubr.f32.gmra.mrb[0].mxu0 0.0
    %v494 = vpop.f32.mrb[0].mxu0
    %v495 = vadd.f32 0.0, %v494
    %v496 = vpop.f32.mrb[0].mxu0
    %v497 = vadd.f32 0.0, %v496
    %498 = vdwg.mxu0
    %499 = vmatprep.subr.mxu0 %v367
    %500 = vmatpush1.msra.mxu0 %v366
    %501 = vmatprep.subr.mxu0 %v371
    %502 = vmatpush1.msra.mxu0 %v370
    %503 = vmatprep.subr.mxu0 %v375
    %504 = vmatpush1.msra.mxu0 %v374
    %505 = vmatprep.subr.mxu0 %v379
    %506 = vmatpush1.msra.mxu0 %v378
    %507 = vmatprep.subr.mxu0 %v383
    %508 = vmatpush1.msra.mxu0 %v382
    %509 = vmatprep.subr.mxu0 %v387
    %510 = vmatpush1.msra.mxu0 %v386
    %511 = vmatprep.subr.mxu0 %v391
    %512 = vmatpush1.msra.mxu0 %v390
    %513 = vmatprep.subr.mxu0 %v395
    %514 = vmatpush1.msra.mxu0 %v394
    %515 = vmatprep.subr.mxu0 %v399
    %516 = vmatpush1.msra.mxu0 %v398
    %517 = vmatprep.subr.mxu0 %v403
    %518 = vmatpush1.msra.mxu0 %v402
    %519 = vmatprep.subr.mxu0 %v407
    %520 = vmatpush1.msra.mxu0 %v406
    %521 = vmatprep.subr.mxu0 %v411
    %522 = vmatpush1.msra.mxu0 %v410
    %523 = vmatprep.subr.mxu0 %v415
    %524 = vmatpush1.msra.mxu0 %v414
    %525 = vmatprep.subr.mxu0 %v419
    %526 = vmatpush1.msra.mxu0 %v418
    %527 = vmatprep.subr.mxu0 %v423
    %528 = vmatpush1.msra.mxu0 %v422
    %529 = vmatprep.subr.mxu0 %v427
    %530 = vmatpush1.msra.mxu0 %v426
    %531 = vmatprep.subr.mxu0 0.0
    %532 = vmatpush1.msra.mxu0 0.0
    %533 = vmatprep.subr.mxu0 0.0
    %534 = vmatpush1.msra.mxu0 0.0
    %535 = vmatprep.subr.mxu0 0.0
    %536 = vmatpush1.msra.mxu0 0.0
    %537 = vmatprep.subr.mxu0 0.0
    %538 = vmatpush1.msra.mxu0 0.0
    %539 = vmatprep.subr.mxu0 0.0
    %540 = vmatpush1.msra.mxu0 0.0
    %541 = vmatprep.subr.mxu0 0.0
    %542 = vmatpush1.msra.mxu0 0.0
    %543 = vmatprep.subr.mxu0 0.0
    %544 = vmatpush1.msra.mxu0 0.0
    %545 = vmatprep.subr.mxu0 0.0
    %546 = vmatpush1.msra.mxu0 0.0
    %547 = vmatprep.subr.mxu0 0.0
    %548 = vmatpush1.msra.mxu0 0.0
    %549 = vmatprep.subr.mxu0 0.0
    %550 = vmatpush1.msra.mxu0 0.0
    %551 = vmatprep.subr.mxu0 0.0
    %552 = vmatpush1.msra.mxu0 0.0
    %553 = vmatprep.subr.mxu0 0.0
    %554 = vmatpush1.msra.mxu0 0.0
    %555 = vmatprep.subr.mxu0 0.0
    %556 = vmatpush1.msra.mxu0 0.0
    %557 = vmatprep.subr.mxu0 0.0
    %558 = vmatpush1.msra.mxu0 0.0
    %559 = vmatprep.subr.mxu0 0.0
    %560 = vmatpush1.msra.mxu0 0.0
    %561 = vmatprep.subr.mxu0 0.0
    %562 = vmatpush1.msra.mxu0 0.0
    %563 = vmatprep.mubr.f32.mxu0 0.0
    %564 = vmatmul.mubr.f32.gmra.mrb[0].mxu0 0.0
    %v565 = vpop.f32.mrb[0].mxu0
    %v566 = vadd.f32 0.0, %v565
    %v567 = vpop.f32.mrb[0].mxu0
    %v568 = vadd.f32 0.0, %v567
    %569 = vdwg.mxu0
    %v570 = vadd.f32 %v360, %v495
    %v571 = vadd.f32 %v361, %v497
    %v572 = vadd.f32 %v362, %v566
    %v573 = vadd.f32 %v363, %v568
    %v574 = vxor.u32 %v570, 2147483648
    %v575 = vmul.f32 %v574, 1.442695
    %v576 = vpow.pop %v575
    %v577 = vadd.f32 %v576, 1.0
    %v578 = vrcp.pop %v577
    %v579 = vmul.f32 1.0, %v578
    %v580 = vxor.u32 %v571, 2147483648
    %v581 = vmul.f32 %v580, 1.442695
    %v582 = vpow.pop %v581
    %v583 = vadd.f32 %v582, 1.0
    %v584 = vrcp.pop %v583
    %v585 = vmul.f32 1.0, %v584
    %v586 = vtanh.pop %v572
    %v587 = vxor.u32 %v573, 2147483648
    %v588 = vmul.f32 %v587, 1.442695
    %v589 = vpow.pop %v588
    %v590 = vadd.f32 %v589, 1.0
    %v591 = vrcp.pop %v590
    %v592 = vmul.f32 1.0, %v591
    %v593 = vmul.f32 %v585, 0.0
    %v594 = vmul.f32 %v579, %v586
    %v595 = vadd.f32 %v593, %v594
    %v596 = vtanh.pop %v595
    %v597 = vmul.f32 %v592, %v596
    %s598 = scalar_lea.vmem [#allocation2], 32
    %v599 = vld [vmem:[%s598] sm:$0xff]
    %v600 = vld [vmem:[%s598 + $0x8] sm:$0xff]
    %v601 = vld [vmem:[%s598 + $0x10] sm:$0xff]
    %v602 = vld [vmem:[%s598 + $0x18] sm:$0xff]
    %603 = vmatprep.subr.mxu0 %v365
    %604 = vmatpush1.msra.mxu0 %v364
    %605 = vmatprep.subr.mxu0 %v369
    %606 = vmatpush1.msra.mxu0 %v368
    %607 = vmatprep.subr.mxu0 %v373
    %608 = vmatpush1.msra.mxu0 %v372
    %609 = vmatprep.subr.mxu0 %v377
    %610 = vmatpush1.msra.mxu0 %v376
    %611 = vmatprep.subr.mxu0 %v381
    %612 = vmatpush1.msra.mxu0 %v380
    %613 = vmatprep.subr.mxu0 %v385
    %614 = vmatpush1.msra.mxu0 %v384
    %615 = vmatprep.subr.mxu0 %v389
    %616 = vmatpush1.msra.mxu0 %v388
    %617 = vmatprep.subr.mxu0 %v393
    %618 = vmatpush1.msra.mxu0 %v392
    %619 = vmatprep.subr.mxu0 %v397
    %620 = vmatpush1.msra.mxu0 %v396
    %621 = vmatprep.subr.mxu0 %v401
    %622 = vmatpush1.msra.mxu0 %v400
    %623 = vmatprep.subr.mxu0 %v405
    %624 = vmatpush1.msra.mxu0 %v404
    %625 = vmatprep.subr.mxu0 %v409
    %626 = vmatpush1.msra.mxu0 %v408
    %627 = vmatprep.subr.mxu0 %v413
    %628 = vmatpush1.msra.mxu0 %v412
    %629 = vmatprep.subr.mxu0 %v417
    %630 = vmatpush1.msra.mxu0 %v416
    %631 = vmatprep.subr.mxu0 %v421
    %632 = vmatpush1.msra.mxu0 %v420
    %633 = vmatprep.subr.mxu0 %v425
    %634 = vmatpush1.msra.mxu0 %v424
    %635 = vmatprep.subr.mxu0 0.0
    %636 = vmatpush1.msra.mxu0 0.0
    %637 = vmatprep.subr.mxu0 0.0
    %638 = vmatpush1.msra.mxu0 0.0
    %639 = vmatprep.subr.mxu0 0.0
    %640 = vmatpush1.msra.mxu0 0.0
    %641 = vmatprep.subr.mxu0 0.0
    %642 = vmatpush1.msra.mxu0 0.0
    %643 = vmatprep.subr.mxu0 0.0
    %644 = vmatpush1.msra.mxu0 0.0
    %645 = vmatprep.subr.mxu0 0.0
    %646 = vmatpush1.msra.mxu0 0.0
    %647 = vmatprep.subr.mxu0 0.0
    %648 = vmatpush1.msra.mxu0 0.0
    %649 = vmatprep.subr.mxu0 0.0
    %650 = vmatpush1.msra.mxu0 0.0
    %651 = vmatprep.subr.mxu0 0.0
    %652 = vmatpush1.msra.mxu0 0.0
    %653 = vmatprep.subr.mxu0 0.0
    %654 = vmatpush1.msra.mxu0 0.0
    %655 = vmatprep.subr.mxu0 0.0
    %656 = vmatpush1.msra.mxu0 0.0
    %657 = vmatprep.subr.mxu0 0.0
    %658 = vmatpush1.msra.mxu0 0.0
    %659 = vmatprep.subr.mxu0 0.0
    %660 = vmatpush1.msra.mxu0 0.0
    %661 = vmatprep.subr.mxu0 0.0
    %662 = vmatpush1.msra.mxu0 0.0
    %663 = vmatprep.subr.mxu0 0.0
    %664 = vmatpush1.msra.mxu0 0.0
    %665 = vmatprep.subr.mxu0 0.0
    %666 = vmatpush1.msra.mxu0 0.0
    %667 = vmatprep.mubr.f32.mxu0 0.0
    %668 = vmatmul.mubr.f32.gmra.mrb[0].mxu0 %v597
    %v669 = vpop.f32.mrb[0].mxu0
    %v670 = vadd.f32 0.0, %v669
    %v671 = vpop.f32.mrb[0].mxu0
    %v672 = vadd.f32 0.0, %v671
    %673 = vdwg.mxu0
    %674 = vmatprep.subr.mxu0 %v367
    %675 = vmatpush1.msra.mxu0 %v366
    %676 = vmatprep.subr.mxu0 %v371
    %677 = vmatpush1.msra.mxu0 %v370
    %678 = vmatprep.subr.mxu0 %v375
    %679 = vmatpush1.msra.mxu0 %v374
    %680 = vmatprep.subr.mxu0 %v379
    %681 = vmatpush1.msra.mxu0 %v378
    %682 = vmatprep.subr.mxu0 %v383
    %683 = vmatpush1.msra.mxu0 %v382
    %684 = vmatprep.subr.mxu0 %v387
    %685 = vmatpush1.msra.mxu0 %v386
    %686 = vmatprep.subr.mxu0 %v391
    %687 = vmatpush1.msra.mxu0 %v390
    %688 = vmatprep.subr.mxu0 %v395
    %689 = vmatpush1.msra.mxu0 %v394
    %690 = vmatprep.subr.mxu0 %v399
    %691 = vmatpush1.msra.mxu0 %v398
    %692 = vmatprep.subr.mxu0 %v403
    %693 = vmatpush1.msra.mxu0 %v402
    %694 = vmatprep.subr.mxu0 %v407
    %695 = vmatpush1.msra.mxu0 %v406
    %696 = vmatprep.subr.mxu0 %v411
    %697 = vmatpush1.msra.mxu0 %v410
    %698 = vmatprep.subr.mxu0 %v415
    %699 = vmatpush1.msra.mxu0 %v414
    %700 = vmatprep.subr.mxu0 %v419
    %701 = vmatpush1.msra.mxu0 %v418
    %702 = vmatprep.subr.mxu0 %v423
    %703 = vmatpush1.msra.mxu0 %v422
    %704 = vmatprep.subr.mxu0 %v427
    %705 = vmatpush1.msra.mxu0 %v426
    %706 = vmatprep.subr.mxu0 0.0
    %707 = vmatpush1.msra.mxu0 0.0
    %708 = vmatprep.subr.mxu0 0.0
    %709 = vmatpush1.msra.mxu0 0.0
    %710 = vmatprep.subr.mxu0 0.0
    %711 = vmatpush1.msra.mxu0 0.0
    %712 = vmatprep.subr.mxu0 0.0
    %713 = vmatpush1.msra.mxu0 0.0
    %714 = vmatprep.subr.mxu0 0.0
    %715 = vmatpush1.msra.mxu0 0.0
    %716 = vmatprep.subr.mxu0 0.0
    %717 = vmatpush1.msra.mxu0 0.0
    %718 = vmatprep.subr.mxu0 0.0
    %719 = vmatpush1.msra.mxu0 0.0
    %720 = vmatprep.subr.mxu0 0.0
    %721 = vmatpush1.msra.mxu0 0.0
    %722 = vmatprep.subr.mxu0 0.0
    %723 = vmatpush1.msra.mxu0 0.0
    %724 = vmatprep.subr.mxu0 0.0
    %725 = vmatpush1.msra.mxu0 0.0
    %726 = vmatprep.subr.mxu0 0.0
    %727 = vmatpush1.msra.mxu0 0.0
    %728 = vmatprep.subr.mxu0 0.0
    %729 = vmatpush1.msra.mxu0 0.0
    %730 = vmatprep.subr.mxu0 0.0
    %731 = vmatpush1.msra.mxu0 0.0
    %732 = vmatprep.subr.mxu0 0.0
    %733 = vmatpush1.msra.mxu0 0.0
    %734 = vmatprep.subr.mxu0 0.0
    %735 = vmatpush1.msra.mxu0 0.0
    %736 = vmatprep.subr.mxu0 0.0
    %737 = vmatpush1.msra.mxu0 0.0
    %738 = vmatprep.mubr.f32.mxu0 0.0
    %739 = vmatmul.mubr.f32.gmra.mrb[0].mxu0 %v597
    %v740 = vpop.f32.mrb[0].mxu0
    %v741 = vadd.f32 0.0, %v740
    %v742 = vpop.f32.mrb[0].mxu0
    %v743 = vadd.f32 0.0, %v742
    %744 = vdwg.mxu0
    %v745 = vadd.f32 %v599, %v670
    %v746 = vadd.f32 %v600, %v672
    %v747 = vadd.f32 %v601, %v741
    %v748 = vadd.f32 %v602, %v743
    %v749 = vxor.u32 %v745, 2147483648
    %v750 = vmul.f32 %v749, 1.442695
    %v751 = vpow.pop %v750
    %v752 = vadd.f32 %v751, 1.0
    %v753 = vrcp.pop %v752
    %v754 = vmul.f32 1.0, %v753
    %v755 = vxor.u32 %v746, 2147483648
    %v756 = vmul.f32 %v755, 1.442695
    %v757 = vpow.pop %v756
    %v758 = vadd.f32 %v757, 1.0
    %v759 = vrcp.pop %v758
    %v760 = vmul.f32 1.0, %v759
    %v761 = vtanh.pop %v747
    %v762 = vxor.u32 %v748, 2147483648
    %v763 = vmul.f32 %v762, 1.442695
    %v764 = vpow.pop %v763
    %v765 = vadd.f32 %v764, 1.0
    %v766 = vrcp.pop %v765
    %v767 = vmul.f32 1.0, %v766
    %v768 = vmul.f32 %v760, %v595
    %v769 = vmul.f32 %v754, %v761
    %v770 = vadd.f32 %v768, %v769
    %v771 = vtanh.pop %v770
    %v772 = vmul.f32 %v767, %v771
    %s773 = scalar_lea.vmem [#allocation2], 64
    %v774 = vld [vmem:[%s773] sm:$0xff]
    %v775 = vld [vmem:[%s773 + $0x8] sm:$0xff]
    %v776 = vld [vmem:[%s773 + $0x10] sm:$0xff]
    %v777 = vld [vmem:[%s773 + $0x18] sm:$0xff]
    %778 = vmatprep.subr.mxu0 %v365
    %779 = vmatpush1.msra.mxu0 %v364
    %780 = vmatprep.subr.mxu0 %v369
    %781 = vmatpush1.msra.mxu0 %v368
    %782 = vmatprep.subr.mxu0 %v373
    %783 = vmatpush1.msra.mxu0 %v372
    %784 = vmatprep.subr.mxu0 %v377
    %785 = vmatpush1.msra.mxu0 %v376
    %786 = vmatprep.subr.mxu0 %v381
    %787 = vmatpush1.msra.mxu0 %v380
    %788 = vmatprep.subr.mxu0 %v385
    %789 = vmatpush1.msra.mxu0 %v384
    %790 = vmatprep.subr.mxu0 %v389
    %791 = vmatpush1.msra.mxu0 %v388
    %792 = vmatprep.subr.mxu0 %v393
    %793 = vmatpush1.msra.mxu0 %v392
    %794 = vmatprep.subr.mxu0 %v397
    %795 = vmatpush1.msra.mxu0 %v396
    %796 = vmatprep.subr.mxu0 %v401
    %797 = vmatpush1.msra.mxu0 %v400
    %798 = vmatprep.subr.mxu0 %v405
    %799 = vmatpush1.msra.mxu0 %v404
    %800 = vmatprep.subr.mxu0 %v409
    %801 = vmatpush1.msra.mxu0 %v408
    %802 = vmatprep.subr.mxu0 %v413
    %803 = vmatpush1.msra.mxu0 %v412
    %804 = vmatprep.subr.mxu0 %v417
    %805 = vmatpush1.msra.mxu0 %v416
    %806 = vmatprep.subr.mxu0 %v421
    %807 = vmatpush1.msra.mxu0 %v420
    %808 = vmatprep.subr.mxu0 %v425
    %809 = vmatpush1.msra.mxu0 %v424
    %810 = vmatprep.subr.mxu0 0.0
    %811 = vmatpush1.msra.mxu0 0.0
    %812 = vmatprep.subr.mxu0 0.0
    %813 = vmatpush1.msra.mxu0 0.0
    %814 = vmatprep.subr.mxu0 0.0
    %815 = vmatpush1.msra.mxu0 0.0
    %816 = vmatprep.subr.mxu0 0.0
    %817 = vmatpush1.msra.mxu0 0.0
    %818 = vmatprep.subr.mxu0 0.0
    %819 = vmatpush1.msra.mxu0 0.0
    %820 = vmatprep.subr.mxu0 0.0
    %821 = vmatpush1.msra.mxu0 0.0
    %822 = vmatprep.subr.mxu0 0.0
    %823 = vmatpush1.msra.mxu0 0.0
    %824 = vmatprep.subr.mxu0 0.0
    %825 = vmatpush1.msra.mxu0 0.0
    %826 = vmatprep.subr.mxu0 0.0
    %827 = vmatpush1.msra.mxu0 0.0
    %828 = vmatprep.subr.mxu0 0.0
    %829 = vmatpush1.msra.mxu0 0.0
    %830 = vmatprep.subr.mxu0 0.0
    %831 = vmatpush1.msra.mxu0 0.0
    %832 = vmatprep.subr.mxu0 0.0
    %833 = vmatpush1.msra.mxu0 0.0
    %834 = vmatprep.subr.mxu0 0.0
    %835 = vmatpush1.msra.mxu0 0.0
    %836 = vmatprep.subr.mxu0 0.0
    %837 = vmatpush1.msra.mxu0 0.0
    %838 = vmatprep.subr.mxu0 0.0
    %839 = vmatpush1.msra.mxu0 0.0
    %840 = vmatprep.subr.mxu0 0.0
    %841 = vmatpush1.msra.mxu0 0.0
    %842 = vmatprep.mubr.f32.mxu0 0.0
    %843 = vmatmul.mubr.f32.gmra.mrb[0].mxu0 %v772
    %v844 = vpop.f32.mrb[0].mxu0
    %v845 = vadd.f32 0.0, %v844
    %v846 = vpop.f32.mrb[0].mxu0
    %v847 = vadd.f32 0.0, %v846
    %848 = vdwg.mxu0
    %849 = vmatprep.subr.mxu0 %v367
    %850 = vmatpush1.msra.mxu0 %v366
    %851 = vmatprep.subr.mxu0 %v371
    %852 = vmatpush1.msra.mxu0 %v370
    %853 = vmatprep.subr.mxu0 %v375
    %854 = vmatpush1.msra.mxu0 %v374
    %855 = vmatprep.subr.mxu0 %v379
    %856 = vmatpush1.msra.mxu0 %v378
    %857 = vmatprep.subr.mxu0 %v383
    %858 = vmatpush1.msra.mxu0 %v382
    %859 = vmatprep.subr.mxu0 %v387
    %860 = vmatpush1.msra.mxu0 %v386
    %861 = vmatprep.subr.mxu0 %v391
    %862 = vmatpush1.msra.mxu0 %v390
    %863 = vmatprep.subr.mxu0 %v395
    %864 = vmatpush1.msra.mxu0 %v394
    %865 = vmatprep.subr.mxu0 %v399
    %866 = vmatpush1.msra.mxu0 %v398
    %867 = vmatprep.subr.mxu0 %v403
    %868 = vmatpush1.msra.mxu0 %v402
    %869 = vmatprep.subr.mxu0 %v407
    %870 = vmatpush1.msra.mxu0 %v406
    %871 = vmatprep.subr.mxu0 %v411
    %872 = vmatpush1.msra.mxu0 %v410
    %873 = vmatprep.subr.mxu0 %v415
    %874 = vmatpush1.msra.mxu0 %v414
    %875 = vmatprep.subr.mxu0 %v419
    %876 = vmatpush1.msra.mxu0 %v418
    %877 = vmatprep.subr.mxu0 %v423
    %878 = vmatpush1.msra.mxu0 %v422
    %879 = vmatprep.subr.mxu0 %v427
    %880 = vmatpush1.msra.mxu0 %v426
    %881 = vmatprep.subr.mxu0 0.0
    %882 = vmatpush1.msra.mxu0 0.0
    %883 = vmatprep.subr.mxu0 0.0
    %884 = vmatpush1.msra.mxu0 0.0
    %885 = vmatprep.subr.mxu0 0.0
    %886 = vmatpush1.msra.mxu0 0.0
    %887 = vmatprep.subr.mxu0 0.0
    %888 = vmatpush1.msra.mxu0 0.0
    %889 = vmatprep.subr.mxu0 0.0
    %890 = vmatpush1.msra.mxu0 0.0
    %891 = vmatprep.subr.mxu0 0.0
    %892 = vmatpush1.msra.mxu0 0.0
    %893 = vmatprep.subr.mxu0 0.0
    %894 = vmatpush1.msra.mxu0 0.0
    %895 = vmatprep.subr.mxu0 0.0
    %896 = vmatpush1.msra.mxu0 0.0
    %897 = vmatprep.subr.mxu0 0.0
    %898 = vmatpush1.msra.mxu0 0.0
    %899 = vmatprep.subr.mxu0 0.0
    %900 = vmatpush1.msra.mxu0 0.0
    %901 = vmatprep.subr.mxu0 0.0
    %902 = vmatpush1.msra.mxu0 0.0
    %903 = vmatprep.subr.mxu0 0.0
    %904 = vmatpush1.msra.mxu0 0.0
    %905 = vmatprep.subr.mxu0 0.0
    %906 = vmatpush1.msra.mxu0 0.0
    %907 = vmatprep.subr.mxu0 0.0
    %908 = vmatpush1.msra.mxu0 0.0
    %909 = vmatprep.subr.mxu0 0.0
    %910 = vmatpush1.msra.mxu0 0.0
    %911 = vmatprep.subr.mxu0 0.0
    %912 = vmatpush1.msra.mxu0 0.0
    %913 = vmatprep.mubr.f32.mxu0 0.0
    %914 = vmatmul.mubr.f32.gmra.mrb[0].mxu0 %v772
    %v915 = vpop.f32.mrb[0].mxu0
    %v916 = vadd.f32 0.0, %v915
    %v917 = vpop.f32.mrb[0].mxu0
    %v918 = vadd.f32 0.0, %v917
    %919 = vdwg.mxu0
    %v920 = vadd.f32 %v774, %v845
    %v921 = vadd.f32 %v775, %v847
    %v922 = vadd.f32 %v776, %v916
    %v923 = vadd.f32 %v777, %v918
    %v924 = vxor.u32 %v920, 2147483648
    %v925 = vmul.f32 %v924, 1.442695
    %v926 = vpow.pop %v925
    %v927 = vadd.f32 %v926, 1.0
    %v928 = vrcp.pop %v927
    %v929 = vmul.f32 1.0, %v928
    %v930 = vxor.u32 %v921, 2147483648
    %v931 = vmul.f32 %v930, 1.442695
    %v932 = vpow.pop %v931
    %v933 = vadd.f32 %v932, 1.0
    %v934 = vrcp.pop %v933
    %v935 = vmul.f32 1.0, %v934
    %v936 = vtanh.pop %v922
    %v937 = vxor.u32 %v923, 2147483648
    %v938 = vmul.f32 %v937, 1.442695
    %v939 = vpow.pop %v938
    %v940 = vadd.f32 %v939, 1.0
    %v941 = vrcp.pop %v940
    %v942 = vmul.f32 1.0, %v941
    %v943 = vmul.f32 %v935, %v770
    %v944 = vmul.f32 %v929, %v936
    %v945 = vadd.f32 %v943, %v944
    %v946 = vtanh.pop %v945
    %v947 = vmul.f32 %v942, %v946
    %s948 = scalar_lea.vmem [#allocation2], 96
    %v949 = vld [vmem:[%s948] sm:$0xff]
    %v950 = vld [vmem:[%s948 + $0x8] sm:$0xff]
    %v951 = vld [vmem:[%s948 + $0x10] sm:$0xff]
    %v952 = vld [vmem:[%s948 + $0x18] sm:$0xff]
    %953 = vmatprep.subr.mxu0 %v365
    %954 = vmatpush1.msra.mxu0 %v364
    %955 = vmatprep.subr.mxu0 %v369
    %956 = vmatpush1.msra.mxu0 %v368
    %957 = vmatprep.subr.mxu0 %v373
    %958 = vmatpush1.msra.mxu0 %v372
    %959 = vmatprep.subr.mxu0 %v377
    %960 = vmatpush1.msra.mxu0 %v376
    %961 = vmatprep.subr.mxu0 %v381
    %962 = vmatpush1.msra.mxu0 %v380
    %963 = vmatprep.subr.mxu0 %v385
    %964 = vmatpush1.msra.mxu0 %v384
    %965 = vmatprep.subr.mxu0 %v389
    %966 = vmatpush1.msra.mxu0 %v388
    %967 = vmatprep.subr.mxu0 %v393
    %968 = vmatpush1.msra.mxu0 %v392
    %969 = vmatprep.subr.mxu0 %v397
    %970 = vmatpush1.msra.mxu0 %v396
    %971 = vmatprep.subr.mxu0 %v401
    %972 = vmatpush1.msra.mxu0 %v400
    %973 = vmatprep.subr.mxu0 %v405
    %974 = vmatpush1.msra.mxu0 %v404
    %975 = vmatprep.subr.mxu0 %v409
    %976 = vmatpush1.msra.mxu0 %v408
    %977 = vmatprep.subr.mxu0 %v413
    %978 = vmatpush1.msra.mxu0 %v412
    %979 = vmatprep.subr.mxu0 %v417
    %980 = vmatpush1.msra.mxu0 %v416
    %981 = vmatprep.subr.mxu0 %v421
    %982 = vmatpush1.msra.mxu0 %v420
    %983 = vmatprep.subr.mxu0 %v425
    %984 = vmatpush1.msra.mxu0 %v424
    %985 = vmatprep.subr.mxu0 0.0
    %986 = vmatpush1.msra.mxu0 0.0
    %987 = vmatprep.subr.mxu0 0.0
    %988 = vmatpush1.msra.mxu0 0.0
    %989 = vmatprep.subr.mxu0 0.0
    %990 = vmatpush1.msra.mxu0 0.0
    %991 = vmatprep.subr.mxu0 0.0
    %992 = vmatpush1.msra.mxu0 0.0
    %993 = vmatprep.subr.mxu0 0.0
    %994 = vmatpush1.msra.mxu0 0.0
    %995 = vmatprep.subr.mxu0 0.0
    %996 = vmatpush1.msra.mxu0 0.0
    %997 = vmatprep.subr.mxu0 0.0
    %998 = vmatpush1.msra.mxu0 0.0
    %999 = vmatprep.subr.mxu0 0.0
    %1000 = vmatpush1.msra.mxu0 0.0
    %1001 = vmatprep.subr.mxu0 0.0
    %1002 = vmatpush1.msra.mxu0 0.0
    %1003 = vmatprep.subr.mxu0 0.0
    %1004 = vmatpush1.msra.mxu0 0.0
    %1005 = vmatprep.subr.mxu0 0.0
    %1006 = vmatpush1.msra.mxu0 0.0
    %1007 = vmatprep.subr.mxu0 0.0
    %1008 = vmatpush1.msra.mxu0 0.0
    %1009 = vmatprep.subr.mxu0 0.0
    %1010 = vmatpush1.msra.mxu0 0.0
    %1011 = vmatprep.subr.mxu0 0.0
    %1012 = vmatpush1.msra.mxu0 0.0
    %1013 = vmatprep.subr.mxu0 0.0
    %1014 = vmatpush1.msra.mxu0 0.0
    %1015 = vmatprep.subr.mxu0 0.0
    %1016 = vmatpush1.msra.mxu0 0.0
    %1017 = vmatprep.mubr.f32.mxu0 0.0
    %1018 = vmatmul.mubr.f32.gmra.mrb[0].mxu0 %v947
    %v1019 = vpop.f32.mrb[0].mxu0
    %v1020 = vadd.f32 0.0, %v1019
    %v1021 = vpop.f32.mrb[0].mxu0
    %v1022 = vadd.f32 0.0, %v1021
    %1023 = vdwg.mxu0
    %1024 = vmatprep.subr.mxu0 %v367
    %1025 = vmatpush1.msra.mxu0 %v366
    %1026 = vmatprep.subr.mxu0 %v371
    %1027 = vmatpush1.msra.mxu0 %v370
    %1028 = vmatprep.subr.mxu0 %v375
    %1029 = vmatpush1.msra.mxu0 %v374
    %1030 = vmatprep.subr.mxu0 %v379
    %1031 = vmatpush1.msra.mxu0 %v378
    %1032 = vmatprep.subr.mxu0 %v383
    %1033 = vmatpush1.msra.mxu0 %v382
    %1034 = vmatprep.subr.mxu0 %v387
    %1035 = vmatpush1.msra.mxu0 %v386
    %1036 = vmatprep.subr.mxu0 %v391
    %1037 = vmatpush1.msra.mxu0 %v390
    %1038 = vmatprep.subr.mxu0 %v395
    %1039 = vmatpush1.msra.mxu0 %v394
    %1040 = vmatprep.subr.mxu0 %v399
    %1041 = vmatpush1.msra.mxu0 %v398
    %1042 = vmatprep.subr.mxu0 %v403
    %1043 = vmatpush1.msra.mxu0 %v402
    %1044 = vmatprep.subr.mxu0 %v407
    %1045 = vmatpush1.msra.mxu0 %v406
    %1046 = vmatprep.subr.mxu0 %v411
    %1047 = vmatpush1.msra.mxu0 %v410
    %1048 = vmatprep.subr.mxu0 %v415
    %1049 = vmatpush1.msra.mxu0 %v414
    %1050 = vmatprep.subr.mxu0 %v419
    %1051 = vmatpush1.msra.mxu0 %v418
    %1052 = vmatprep.subr.mxu0 %v423
    %1053 = vmatpush1.msra.mxu0 %v422
    %1054 = vmatprep.subr.mxu0 %v427
    %1055 = vmatpush1.msra.mxu0 %v426
    %1056 = vmatprep.subr.mxu0 0.0
    %1057 = vmatpush1.msra.mxu0 0.0
    %1058 = vmatprep.subr.mxu0 0.0
    %1059 = vmatpush1.msra.mxu0 0.0
    %1060 = vmatprep.subr.mxu0 0.0
    %1061 = vmatpush1.msra.mxu0 0.0
    %1062 = vmatprep.subr.mxu0 0.0
    %1063 = vmatpush1.msra.mxu0 0.0
    %1064 = vmatprep.subr.mxu0 0.0
    %1065 = vmatpush1.msra.mxu0 0.0
    %1066 = vmatprep.subr.mxu0 0.0
    %1067 = vmatpush1.msra.mxu0 0.0
    %1068 = vmatprep.subr.mxu0 0.0
    %1069 = vmatpush1.msra.mxu0 0.0
    %1070 = vmatprep.subr.mxu0 0.0
    %1071 = vmatpush1.msra.mxu0 0.0
    %1072 = vmatprep.subr.mxu0 0.0
    %1073 = vmatpush1.msra.mxu0 0.0
    %1074 = vmatprep.subr.mxu0 0.0
    %1075 = vmatpush1.msra.mxu0 0.0
    %1076 = vmatprep.subr.mxu0 0.0
    %1077 = vmatpush1.msra.mxu0 0.0
    %1078 = vmatprep.subr.mxu0 0.0
    %1079 = vmatpush1.msra.mxu0 0.0
    %1080 = vmatprep.subr.mxu0 0.0
    %1081 = vmatpush1.msra.mxu0 0.0
    %1082 = vmatprep.subr.mxu0 0.0
    %1083 = vmatpush1.msra.mxu0 0.0
    %1084 = vmatprep.subr.mxu0 0.0
    %1085 = vmatpush1.msra.mxu0 0.0
    %1086 = vmatprep.subr.mxu0 0.0
    %1087 = vmatpush1.msra.mxu0 0.0
    %1088 = vmatprep.mubr.f32.mxu0 0.0
    %1089 = vmatmul.mubr.f32.gmra.mrb[0].mxu0 %v947
    %v1090 = vpop.f32.mrb[0].mxu0
    %v1091 = vadd.f32 0.0, %v1090
    %v1092 = vpop.f32.mrb[0].mxu0
    %v1093 = vadd.f32 0.0, %v1092
    %1094 = vdwg.mxu0
    %v1095 = vadd.f32 %v949, %v1020
    %v1096 = vadd.f32 %v950, %v1022
    %v1097 = vadd.f32 %v951, %v1091
    %v1098 = vadd.f32 %v952, %v1093
    %v1099 = vxor.u32 %v1095, 2147483648
    %v1100 = vmul.f32 %v1099, 1.442695
    %v1101 = vpow.pop %v1100
    %v1102 = vadd.f32 %v1101, 1.0
    %v1103 = vrcp.pop %v1102
    %v1104 = vmul.f32 1.0, %v1103
    %v1105 = vxor.u32 %v1096, 2147483648
    %v1106 = vmul.f32 %v1105, 1.442695
    %v1107 = vpow.pop %v1106
    %v1108 = vadd.f32 %v1107, 1.0
    %v1109 = vrcp.pop %v1108
    %v1110 = vmul.f32 1.0, %v1109
    %v1111 = vtanh.pop %v1097
    %v1112 = vxor.u32 %v1098, 2147483648
    %v1113 = vmul.f32 %v1112, 1.442695
    %v1114 = vpow.pop %v1113
    %v1115 = vadd.f32 %v1114, 1.0
    %v1116 = vrcp.pop %v1115
    %v1117 = vmul.f32 1.0, %v1116
    %v1118 = vmul.f32 %v1110, %v945
    %v1119 = vmul.f32 %v1104, %v1111
    %v1120 = vadd.f32 %v1118, %v1119
    %v1121 = vtanh.pop %v1120
    %v1122 = vmul.f32 %v1117, %v1121
    %s1123 = scalar_lea.vmem [#allocation2], 128
    %v1124 = vld [vmem:[%s1123] sm:$0xff]
    %v1125 = vld [vmem:[%s1123 + $0x8] sm:$0xff]
    %v1126 = vld [vmem:[%s1123 + $0x10] sm:$0xff]
    %v1127 = vld [vmem:[%s1123 + $0x18] sm:$0xff]
    %1128 = vmatprep.subr.mxu0 %v365
    %1129 = vmatpush1.msra.mxu0 %v364
    %1130 = vmatprep.subr.mxu0 %v369
    %1131 = vmatpush1.msra.mxu0 %v368
    %1132 = vmatprep.subr.mxu0 %v373
    %1133 = vmatpush1.msra.mxu0 %v372
    %1134 = vmatprep.subr.mxu0 %v377
    %1135 = vmatpush1.msra.mxu0 %v376
    %1136 = vmatprep.subr.mxu0 %v381
    %1137 = vmatpush1.msra.mxu0 %v380
    %1138 = vmatprep.subr.mxu0 %v385
    %1139 = vmatpush1.msra.mxu0 %v384
    %1140 = vmatprep.subr.mxu0 %v389
    %1141 = vmatpush1.msra.mxu0 %v388
    %1142 = vmatprep.subr.mxu0 %v393
    %1143 = vmatpush1.msra.mxu0 %v392
    %1144 = vmatprep.subr.mxu0 %v397
    %1145 = vmatpush1.msra.mxu0 %v396
    %1146 = vmatprep.subr.mxu0 %v401
    %1147 = vmatpush1.msra.mxu0 %v400
    %1148 = vmatprep.subr.mxu0 %v405
    %1149 = vmatpush1.msra.mxu0 %v404
    %1150 = vmatprep.subr.mxu0 %v409
    %1151 = vmatpush1.msra.mxu0 %v408
    %1152 = vmatprep.subr.mxu0 %v413
    %1153 = vmatpush1.msra.mxu0 %v412
    %1154 = vmatprep.subr.mxu0 %v417
    %1155 = vmatpush1.msra.mxu0 %v416
    %1156 = vmatprep.subr.mxu0 %v421
    %1157 = vmatpush1.msra.mxu0 %v420
    %1158 = vmatprep.subr.mxu0 %v425
    %1159 = vmatpush1.msra.mxu0 %v424
    %1160 = vmatprep.subr.mxu0 0.0
    %1161 = vmatpush1.msra.mxu0 0.0
    %1162 = vmatprep.subr.mxu0 0.0
    %1163 = vmatpush1.msra.mxu0 0.0
    %1164 = vmatprep.subr.mxu0 0.0
    %1165 = vmatpush1.msra.mxu0 0.0
    %1166 = vmatprep.subr.mxu0 0.0
    %1167 = vmatpush1.msra.mxu0 0.0
    %1168 = vmatprep.subr.mxu0 0.0
    %1169 = vmatpush1.msra.mxu0 0.0
    %1170 = vmatprep.subr.mxu0 0.0
    %1171 = vmatpush1.msra.mxu0 0.0
    %1172 = vmatprep.subr.mxu0 0.0
    %1173 = vmatpush1.msra.mxu0 0.0
    %1174 = vmatprep.subr.mxu0 0.0
    %1175 = vmatpush1.msra.mxu0 0.0
    %1176 = vmatprep.subr.mxu0 0.0
    %1177 = vmatpush1.msra.mxu0 0.0
    %1178 = vmatprep.subr.mxu0 0.0
    %1179 = vmatpush1.msra.mxu0 0.0
    %1180 = vmatprep.subr.mxu0 0.0
    %1181 = vmatpush1.msra.mxu0 0.0
    %1182 = vmatprep.subr.mxu0 0.0
    %1183 = vmatpush1.msra.mxu0 0.0
    %1184 = vmatprep.subr.mxu0 0.0
    %1185 = vmatpush1.msra.mxu0 0.0
    %1186 = vmatprep.subr.mxu0 0.0
    %1187 = vmatpush1.msra.mxu0 0.0
    %1188 = vmatprep.subr.mxu0 0.0
    %1189 = vmatpush1.msra.mxu0 0.0
    %1190 = vmatprep.subr.mxu0 0.0
    %1191 = vmatpush1.msra.mxu0 0.0
    %1192 = vmatprep.mubr.f32.mxu0 0.0
    %1193 = vmatmul.mubr.f32.gmra.mrb[0].mxu0 %v1122
    %v1194 = vpop.f32.mrb[0].mxu0
    %v1195 = vadd.f32 0.0, %v1194
    %v1196 = vpop.f32.mrb[0].mxu0
    %v1197 = vadd.f32 0.0, %v1196
    %1198 = vdwg.mxu0
    %1199 = vmatprep.subr.mxu0 %v367
    %1200 = vmatpush1.msra.mxu0 %v366
    %1201 = vmatprep.subr.mxu0 %v371
    %1202 = vmatpush1.msra.mxu0 %v370
    %1203 = vmatprep.subr.mxu0 %v375
    %1204 = vmatpush1.msra.mxu0 %v374
    %1205 = vmatprep.subr.mxu0 %v379
    %1206 = vmatpush1.msra.mxu0 %v378
    %1207 = vmatprep.subr.mxu0 %v383
    %1208 = vmatpush1.msra.mxu0 %v382
    %1209 = vmatprep.subr.mxu0 %v387
    %1210 = vmatpush1.msra.mxu0 %v386
    %1211 = vmatprep.subr.mxu0 %v391
    %1212 = vmatpush1.msra.mxu0 %v390
    %1213 = vmatprep.subr.mxu0 %v395
    %1214 = vmatpush1.msra.mxu0 %v394
    %1215 = vmatprep.subr.mxu0 %v399
    %1216 = vmatpush1.msra.mxu0 %v398
    %1217 = vmatprep.subr.mxu0 %v403
    %1218 = vmatpush1.msra.mxu0 %v402
    %1219 = vmatprep.subr.mxu0 %v407
    %1220 = vmatpush1.msra.mxu0 %v406
    %1221 = vmatprep.subr.mxu0 %v411
    %1222 = vmatpush1.msra.mxu0 %v410
    %1223 = vmatprep.subr.mxu0 %v415
    %1224 = vmatpush1.msra.mxu0 %v414
    %1225 = vmatprep.subr.mxu0 %v419
    %1226 = vmatpush1.msra.mxu0 %v418
    %1227 = vmatprep.subr.mxu0 %v423
    %1228 = vmatpush1.msra.mxu0 %v422
    %1229 = vmatprep.subr.mxu0 %v427
    %1230 = vmatpush1.msra.mxu0 %v426
    %1231 = vmatprep.subr.mxu0 0.0
    %1232 = vmatpush1.msra.mxu0 0.0
    %1233 = vmatprep.subr.mxu0 0.0
    %1234 = vmatpush1.msra.mxu0 0.0
    %1235 = vmatprep.subr.mxu0 0.0
    %1236 = vmatpush1.msra.mxu0 0.0
    %1237 = vmatprep.subr.mxu0 0.0
    %1238 = vmatpush1.msra.mxu0 0.0
    %1239 = vmatprep.subr.mxu0 0.0
    %1240 = vmatpush1.msra.mxu0 0.0
    %1241 = vmatprep.subr.mxu0 0.0
    %1242 = vmatpush1.msra.mxu0 0.0
    %1243 = vmatprep.subr.mxu0 0.0
    %1244 = vmatpush1.msra.mxu0 0.0
    %1245 = vmatprep.subr.mxu0 0.0
    %1246 = vmatpush1.msra.mxu0 0.0
    %1247 = vmatprep.subr.mxu0 0.0
    %1248 = vmatpush1.msra.mxu0 0.0
    %1249 = vmatprep.subr.mxu0 0.0
    %1250 = vmatpush1.msra.mxu0 0.0
    %1251 = vmatprep.subr.mxu0 0.0
    %1252 = vmatpush1.msra.mxu0 0.0
    %1253 = vmatprep.subr.mxu0 0.0
    %1254 = vmatpush1.msra.mxu0 0.0
    %1255 = vmatprep.subr.mxu0 0.0
    %1256 = vmatpush1.msra.mxu0 0.0
    %1257 = vmatprep.subr.mxu0 0.0
    %1258 = vmatpush1.msra.mxu0 0.0
    %1259 = vmatprep.subr.mxu0 0.0
    %1260 = vmatpush1.msra.mxu0 0.0
    %1261 = vmatprep.subr.mxu0 0.0
    %1262 = vmatpush1.msra.mxu0 0.0
    %1263 = vmatprep.mubr.f32.mxu0 0.0
    %1264 = vmatmul.mubr.f32.gmra.mrb[0].mxu0 %v1122
    %v1265 = vpop.f32.mrb[0].mxu0
    %v1266 = vadd.f32 0.0, %v1265
    %v1267 = vpop.f32.mrb[0].mxu0
    %v1268 = vadd.f32 0.0, %v1267
    %1269 = vdwg.mxu0
    %v1270 = vadd.f32 %v1124, %v1195
    %v1271 = vadd.f32 %v1125, %v1197
    %v1272 = vadd.f32 %v1126, %v1266
    %v1273 = vadd.f32 %v1127, %v1268
    %v1274 = vxor.u32 %v1270, 2147483648
    %v1275 = vmul.f32 %v1274, 1.442695
    %v1276 = vpow.pop %v1275
    %v1277 = vadd.f32 %v1276, 1.0
    %v1278 = vrcp.pop %v1277
    %v1279 = vmul.f32 1.0, %v1278
    %v1280 = vxor.u32 %v1271, 2147483648
    %v1281 = vmul.f32 %v1280, 1.442695
    %v1282 = vpow.pop %v1281
    %v1283 = vadd.f32 %v1282, 1.0
    %v1284 = vrcp.pop %v1283
    %v1285 = vmul.f32 1.0, %v1284
    %v1286 = vtanh.pop %v1272
    %v1287 = vxor.u32 %v1273, 2147483648
    %v1288 = vmul.f32 %v1287, 1.442695
    %v1289 = vpow.pop %v1288
    %v1290 = vadd.f32 %v1289, 1.0
    %v1291 = vrcp.pop %v1290
    %v1292 = vmul.f32 1.0, %v1291
    %v1293 = vmul.f32 %v1285, %v1120
    %v1294 = vmul.f32 %v1279, %v1286
    %v1295 = vadd.f32 %v1293, %v1294
    %v1296 = vtanh.pop %v1295
    %v1297 = vmul.f32 %v1292, %v1296
    %s1298 = scalar_lea.vmem [#allocation2], 160
    %v1299 = vld [vmem:[%s1298] sm:$0xff]
    %v1300 = vld [vmem:[%s1298 + $0x8] sm:$0xff]
    %v1301 = vld [vmem:[%s1298 + $0x10] sm:$0xff]
    %v1302 = vld [vmem:[%s1298 + $0x18] sm:$0xff]
    %1303 = vmatprep.subr.mxu0 %v365
    %1304 = vmatpush1.msra.mxu0 %v364
    %1305 = vmatprep.subr.mxu0 %v369
    %1306 = vmatpush1.msra.mxu0 %v368
    %1307 = vmatprep.subr.mxu0 %v373
    %1308 = vmatpush1.msra.mxu0 %v372
    %1309 = vmatprep.subr.mxu0 %v377
    %1310 = vmatpush1.msra.mxu0 %v376
    %1311 = vmatprep.subr.mxu0 %v381
    %1312 = vmatpush1.msra.mxu0 %v380
    %1313 = vmatprep.subr.mxu0 %v385
    %1314 = vmatpush1.msra.mxu0 %v384
    %1315 = vmatprep.subr.mxu0 %v389
    %1316 = vmatpush1.msra.mxu0 %v388
    %1317 = vmatprep.subr.mxu0 %v393
    %1318 = vmatpush1.msra.mxu0 %v392
    %1319 = vmatprep.subr.mxu0 %v397
    %1320 = vmatpush1.msra.mxu0 %v396
    %1321 = vmatprep.subr.mxu0 %v401
    %1322 = vmatpush1.msra.mxu0 %v400
    %1323 = vmatprep.subr.mxu0 %v405
    %1324 = vmatpush1.msra.mxu0 %v404
    %1325 = vmatprep.subr.mxu0 %v409
    %1326 = vmatpush1.msra.mxu0 %v408
    %1327 = vmatprep.subr.mxu0 %v413
    %1328 = vmatpush1.msra.mxu0 %v412
    %1329 = vmatprep.subr.mxu0 %v417
    %1330 = vmatpush1.msra.mxu0 %v416
    %1331 = vmatprep.subr.mxu0 %v421
    %1332 = vmatpush1.msra.mxu0 %v420
    %1333 = vmatprep.subr.mxu0 %v425
    %1334 = vmatpush1.msra.mxu0 %v424
    %1335 = vmatprep.subr.mxu0 0.0
    %1336 = vmatpush1.msra.mxu0 0.0
    %1337 = vmatprep.subr.mxu0 0.0
    %1338 = vmatpush1.msra.mxu0 0.0
    %1339 = vmatprep.subr.mxu0 0.0
    %1340 = vmatpush1.msra.mxu0 0.0
    %1341 = vmatprep.subr.mxu0 0.0
    %1342 = vmatpush1.msra.mxu0 0.0
    %1343 = vmatprep.subr.mxu0 0.0
    %1344 = vmatpush1.msra.mxu0 0.0
    %1345 = vmatprep.subr.mxu0 0.0
    %1346 = vmatpush1.msra.mxu0 0.0
    %1347 = vmatprep.subr.mxu0 0.0
    %1348 = vmatpush1.msra.mxu0 0.0
    %1349 = vmatprep.subr.mxu0 0.0
    %1350 = vmatpush1.msra.mxu0 0.0
    %1351 = vmatprep.subr.mxu0 0.0
    %1352 = vmatpush1.msra.mxu0 0.0
    %1353 = vmatprep.subr.mxu0 0.0
    %1354 = vmatpush1.msra.mxu0 0.0
    %1355 = vmatprep.subr.mxu0 0.0
    %1356 = vmatpush1.msra.mxu0 0.0
    %1357 = vmatprep.subr.mxu0 0.0
    %1358 = vmatpush1.msra.mxu0 0.0
    %1359 = vmatprep.subr.mxu0 0.0
    %1360 = vmatpush1.msra.mxu0 0.0
    %1361 = vmatprep.subr.mxu0 0.0
    %1362 = vmatpush1.msra.mxu0 0.0
    %1363 = vmatprep.subr.mxu0 0.0
    %1364 = vmatpush1.msra.mxu0 0.0
    %1365 = vmatprep.subr.mxu0 0.0
    %1366 = vmatpush1.msra.mxu0 0.0
    %1367 = vmatprep.mubr.f32.mxu0 0.0
    %1368 = vmatmul.mubr.f32.gmra.mrb[0].mxu0 %v1297
    %v1369 = vpop.f32.mrb[0].mxu0
    %v1370 = vadd.f32 0.0, %v1369
    %v1371 = vpop.f32.mrb[0].mxu0
    %v1372 = vadd.f32 0.0, %v1371
    %1373 = vdwg.mxu0
    %1374 = vmatprep.subr.mxu0 %v367
    %1375 = vmatpush1.msra.mxu0 %v366
    %1376 = vmatprep.subr.mxu0 %v371
    %1377 = vmatpush1.msra.mxu0 %v370
    %1378 = vmatprep.subr.mxu0 %v375
    %1379 = vmatpush1.msra.mxu0 %v374
    %1380 = vmatprep.subr.mxu0 %v379
    %1381 = vmatpush1.msra.mxu0 %v378
    %1382 = vmatprep.subr.mxu0 %v383
    %1383 = vmatpush1.msra.mxu0 %v382
    %1384 = vmatprep.subr.mxu0 %v387
    %1385 = vmatpush1.msra.mxu0 %v386
    %1386 = vmatprep.subr.mxu0 %v391
    %1387 = vmatpush1.msra.mxu0 %v390
    %1388 = vmatprep.subr.mxu0 %v395
    %1389 = vmatpush1.msra.mxu0 %v394
    %1390 = vmatprep.subr.mxu0 %v399
    %1391 = vmatpush1.msra.mxu0 %v398
    %1392 = vmatprep.subr.mxu0 %v403
    %1393 = vmatpush1.msra.mxu0 %v402
    %1394 = vmatprep.subr.mxu0 %v407
    %1395 = vmatpush1.msra.mxu0 %v406
    %1396 = vmatprep.subr.mxu0 %v411
    %1397 = vmatpush1.msra.mxu0 %v410
    %1398 = vmatprep.subr.mxu0 %v415
    %1399 = vmatpush1.msra.mxu0 %v414
    %1400 = vmatprep.subr.mxu0 %v419
    %1401 = vmatpush1.msra.mxu0 %v418
    %1402 = vmatprep.subr.mxu0 %v423
    %1403 = vmatpush1.msra.mxu0 %v422
    %1404 = vmatprep.subr.mxu0 %v427
    %1405 = vmatpush1.msra.mxu0 %v426
    %1406 = vmatprep.subr.mxu0 0.0
    %1407 = vmatpush1.msra.mxu0 0.0
    %1408 = vmatprep.subr.mxu0 0.0
    %1409 = vmatpush1.msra.mxu0 0.0
    %1410 = vmatprep.subr.mxu0 0.0
    %1411 = vmatpush1.msra.mxu0 0.0
    %1412 = vmatprep.subr.mxu0 0.0
    %1413 = vmatpush1.msra.mxu0 0.0
    %1414 = vmatprep.subr.mxu0 0.0
    %1415 = vmatpush1.msra.mxu0 0.0
    %1416 = vmatprep.subr.mxu0 0.0
    %1417 = vmatpush1.msra.mxu0 0.0
    %1418 = vmatprep.subr.mxu0 0.0
    %1419 = vmatpush1.msra.mxu0 0.0
    %1420 = vmatprep.subr.mxu0 0.0
    %1421 = vmatpush1.msra.mxu0 0.0
    %1422 = vmatprep.subr.mxu0 0.0
    %1423 = vmatpush1.msra.mxu0 0.0
    %1424 = vmatprep.subr.mxu0 0.0
    %1425 = vmatpush1.msra.mxu0 0.0
    %1426 = vmatprep.subr.mxu0 0.0
    %1427 = vmatpush1.msra.mxu0 0.0
    %1428 = vmatprep.subr.mxu0 0.0
    %1429 = vmatpush1.msra.mxu0 0.0
    %1430 = vmatprep.subr.mxu0 0.0
    %1431 = vmatpush1.msra.mxu0 0.0
    %1432 = vmatprep.subr.mxu0 0.0
    %1433 = vmatpush1.msra.mxu0 0.0
    %1434 = vmatprep.subr.mxu0 0.0
    %1435 = vmatpush1.msra.mxu0 0.0
    %1436 = vmatprep.subr.mxu0 0.0
    %1437 = vmatpush1.msra.mxu0 0.0
    %1438 = vmatprep.mubr.f32.mxu0 0.0
    %1439 = vmatmul.mubr.f32.gmra.mrb[0].mxu0 %v1297
    %v1440 = vpop.f32.mrb[0].mxu0
    %v1441 = vadd.f32 0.0, %v1440
    %v1442 = vpop.f32.mrb[0].mxu0
    %v1443 = vadd.f32 0.0, %v1442
    %1444 = vdwg.mxu0
    %v1445 = vadd.f32 %v1299, %v1370
    %v1446 = vadd.f32 %v1300, %v1372
    %v1447 = vadd.f32 %v1301, %v1441
    %v1448 = vadd.f32 %v1302, %v1443
    %v1449 = vxor.u32 %v1445, 2147483648
    %v1450 = vmul.f32 %v1449, 1.442695
    %v1451 = vpow.pop %v1450
    %v1452 = vadd.f32 %v1451, 1.0
    %v1453 = vrcp.pop %v1452
    %v1454 = vmul.f32 1.0, %v1453
    %v1455 = vxor.u32 %v1446, 2147483648
    %v1456 = vmul.f32 %v1455, 1.442695
    %v1457 = vpow.pop %v1456
    %v1458 = vadd.f32 %v1457, 1.0
    %v1459 = vrcp.pop %v1458
    %v1460 = vmul.f32 1.0, %v1459
    %v1461 = vtanh.pop %v1447
    %v1462 = vxor.u32 %v1448, 2147483648
    %v1463 = vmul.f32 %v1462, 1.442695
    %v1464 = vpow.pop %v1463
    %v1465 = vadd.f32 %v1464, 1.0
    %v1466 = vrcp.pop %v1465
    %v1467 = vmul.f32 1.0, %v1466
    %v1468 = vmul.f32 %v1460, %v1295
    %v1469 = vmul.f32 %v1454, %v1461
    %v1470 = vadd.f32 %v1468, %v1469
    %v1471 = vtanh.pop %v1470
    %v1472 = vmul.f32 %v1467, %v1471
    %s1473 = scalar_lea.vmem [#allocation2], 192
    %v1474 = vld [vmem:[%s1473] sm:$0xff]
    %v1475 = vld [vmem:[%s1473 + $0x8] sm:$0xff]
    %v1476 = vld [vmem:[%s1473 + $0x10] sm:$0xff]
    %v1477 = vld [vmem:[%s1473 + $0x18] sm:$0xff]
    %1478 = vmatprep.subr.mxu0 %v365
    %1479 = vmatpush1.msra.mxu0 %v364
    %1480 = vmatprep.subr.mxu0 %v369
    %1481 = vmatpush1.msra.mxu0 %v368
    %1482 = vmatprep.subr.mxu0 %v373
    %1483 = vmatpush1.msra.mxu0 %v372
    %1484 = vmatprep.subr.mxu0 %v377
    %1485 = vmatpush1.msra.mxu0 %v376
    %1486 = vmatprep.subr.mxu0 %v381
    %1487 = vmatpush1.msra.mxu0 %v380
    %1488 = vmatprep.subr.mxu0 %v385
    %1489 = vmatpush1.msra.mxu0 %v384
    %1490 = vmatprep.subr.mxu0 %v389
    %1491 = vmatpush1.msra.mxu0 %v388
    %1492 = vmatprep.subr.mxu0 %v393
    %1493 = vmatpush1.msra.mxu0 %v392
    %1494 = vmatprep.subr.mxu0 %v397
    %1495 = vmatpush1.msra.mxu0 %v396
    %1496 = vmatprep.subr.mxu0 %v401
    %1497 = vmatpush1.msra.mxu0 %v400
    %1498 = vmatprep.subr.mxu0 %v405
    %1499 = vmatpush1.msra.mxu0 %v404
    %1500 = vmatprep.subr.mxu0 %v409
    %1501 = vmatpush1.msra.mxu0 %v408
    %1502 = vmatprep.subr.mxu0 %v413
    %1503 = vmatpush1.msra.mxu0 %v412
    %1504 = vmatprep.subr.mxu0 %v417
    %1505 = vmatpush1.msra.mxu0 %v416
    %1506 = vmatprep.subr.mxu0 %v421
    %1507 = vmatpush1.msra.mxu0 %v420
    %1508 = vmatprep.subr.mxu0 %v425
    %1509 = vmatpush1.msra.mxu0 %v424
    %1510 = vmatprep.subr.mxu0 0.0
    %1511 = vmatpush1.msra.mxu0 0.0
    %1512 = vmatprep.subr.mxu0 0.0
    %1513 = vmatpush1.msra.mxu0 0.0
    %1514 = vmatprep.subr.mxu0 0.0
    %1515 = vmatpush1.msra.mxu0 0.0
    %1516 = vmatprep.subr.mxu0 0.0
    %1517 = vmatpush1.msra.mxu0 0.0
    %1518 = vmatprep.subr.mxu0 0.0
    %1519 = vmatpush1.msra.mxu0 0.0
    %1520 = vmatprep.subr.mxu0 0.0
    %1521 = vmatpush1.msra.mxu0 0.0
    %1522 = vmatprep.subr.mxu0 0.0
    %1523 = vmatpush1.msra.mxu0 0.0
    %1524 = vmatprep.subr.mxu0 0.0
    %1525 = vmatpush1.msra.mxu0 0.0
    %1526 = vmatprep.subr.mxu0 0.0
    %1527 = vmatpush1.msra.mxu0 0.0
    %1528 = vmatprep.subr.mxu0 0.0
    %1529 = vmatpush1.msra.mxu0 0.0
    %1530 = vmatprep.subr.mxu0 0.0
    %1531 = vmatpush1.msra.mxu0 0.0
    %1532 = vmatprep.subr.mxu0 0.0
    %1533 = vmatpush1.msra.mxu0 0.0
    %1534 = vmatprep.subr.mxu0 0.0
    %1535 = vmatpush1.msra.mxu0 0.0
    %1536 = vmatprep.subr.mxu0 0.0
    %1537 = vmatpush1.msra.mxu0 0.0
    %1538 = vmatprep.subr.mxu0 0.0
    %1539 = vmatpush1.msra.mxu0 0.0
    %1540 = vmatprep.subr.mxu0 0.0
    %1541 = vmatpush1.msra.mxu0 0.0
    %1542 = vmatprep.mubr.f32.mxu0 0.0
    %1543 = vmatmul.mubr.f32.gmra.mrb[0].mxu0 %v1472
    %v1544 = vpop.f32.mrb[0].mxu0
    %v1545 = vadd.f32 0.0, %v1544
    %v1546 = vpop.f32.mrb[0].mxu0
    %v1547 = vadd.f32 0.0, %v1546
    %1548 = vdwg.mxu0
    %1549 = vmatprep.subr.mxu0 %v367
    %1550 = vmatpush1.msra.mxu0 %v366
    %1551 = vmatprep.subr.mxu0 %v371
    %1552 = vmatpush1.msra.mxu0 %v370
    %1553 = vmatprep.subr.mxu0 %v375
    %1554 = vmatpush1.msra.mxu0 %v374
    %1555 = vmatprep.subr.mxu0 %v379
    %1556 = vmatpush1.msra.mxu0 %v378
    %1557 = vmatprep.subr.mxu0 %v383
    %1558 = vmatpush1.msra.mxu0 %v382
    %1559 = vmatprep.subr.mxu0 %v387
    %1560 = vmatpush1.msra.mxu0 %v386
    %1561 = vmatprep.subr.mxu0 %v391
    %1562 = vmatpush1.msra.mxu0 %v390
    %1563 = vmatprep.subr.mxu0 %v395
    %1564 = vmatpush1.msra.mxu0 %v394
    %1565 = vmatprep.subr.mxu0 %v399
    %1566 = vmatpush1.msra.mxu0 %v398
    %1567 = vmatprep.subr.mxu0 %v403
    %1568 = vmatpush1.msra.mxu0 %v402
    %1569 = vmatprep.subr.mxu0 %v407
    %1570 = vmatpush1.msra.mxu0 %v406
    %1571 = vmatprep.subr.mxu0 %v411
    %1572 = vmatpush1.msra.mxu0 %v410
    %1573 = vmatprep.subr.mxu0 %v415
    %1574 = vmatpush1.msra.mxu0 %v414
    %1575 = vmatprep.subr.mxu0 %v419
    %1576 = vmatpush1.msra.mxu0 %v418
    %1577 = vmatprep.subr.mxu0 %v423
    %1578 = vmatpush1.msra.mxu0 %v422
    %1579 = vmatprep.subr.mxu0 %v427
    %1580 = vmatpush1.msra.mxu0 %v426
    %1581 = vmatprep.subr.mxu0 0.0
    %1582 = vmatpush1.msra.mxu0 0.0
    %1583 = vmatprep.subr.mxu0 0.0
    %1584 = vmatpush1.msra.mxu0 0.0
    %1585 = vmatprep.subr.mxu0 0.0
    %1586 = vmatpush1.msra.mxu0 0.0
    %1587 = vmatprep.subr.mxu0 0.0
    %1588 = vmatpush1.msra.mxu0 0.0
    %1589 = vmatprep.subr.mxu0 0.0
    %1590 = vmatpush1.msra.mxu0 0.0
    %1591 = vmatprep.subr.mxu0 0.0
    %1592 = vmatpush1.msra.mxu0 0.0
    %1593 = vmatprep.subr.mxu0 0.0
    %1594 = vmatpush1.msra.mxu0 0.0
    %1595 = vmatprep.subr.mxu0 0.0
    %1596 = vmatpush1.msra.mxu0 0.0
    %1597 = vmatprep.subr.mxu0 0.0
    %1598 = vmatpush1.msra.mxu0 0.0
    %1599 = vmatprep.subr.mxu0 0.0
    %1600 = vmatpush1.msra.mxu0 0.0
    %1601 = vmatprep.subr.mxu0 0.0
    %1602 = vmatpush1.msra.mxu0 0.0
    %1603 = vmatprep.subr.mxu0 0.0
    %1604 = vmatpush1.msra.mxu0 0.0
    %1605 = vmatprep.subr.mxu0 0.0
    %1606 = vmatpush1.msra.mxu0 0.0
    %1607 = vmatprep.subr.mxu0 0.0
    %1608 = vmatpush1.msra.mxu0 0.0
    %1609 = vmatprep.subr.mxu0 0.0
    %1610 = vmatpush1.msra.mxu0 0.0
    %1611 = vmatprep.subr.mxu0 0.0
    %1612 = vmatpush1.msra.mxu0 0.0
    %1613 = vmatprep.mubr.f32.mxu0 0.0
    %1614 = vmatmul.mubr.f32.gmra.mrb[0].mxu0 %v1472
    %v1615 = vpop.f32.mrb[0].mxu0
    %v1616 = vadd.f32 0.0, %v1615
    %v1617 = vpop.f32.mrb[0].mxu0
    %v1618 = vadd.f32 0.0, %v1617
    %1619 = vdwg.mxu0
    %v1620 = vadd.f32 %v1474, %v1545
    %v1621 = vadd.f32 %v1475, %v1547
    %v1622 = vadd.f32 %v1476, %v1616
    %v1623 = vadd.f32 %v1477, %v1618
    %v1624 = vxor.u32 %v1620, 2147483648
    %v1625 = vmul.f32 %v1624, 1.442695
    %v1626 = vpow.pop %v1625
    %v1627 = vadd.f32 %v1626, 1.0
    %v1628 = vrcp.pop %v1627
    %v1629 = vmul.f32 1.0, %v1628
    %v1630 = vxor.u32 %v1621, 2147483648
    %v1631 = vmul.f32 %v1630, 1.442695
    %v1632 = vpow.pop %v1631
    %v1633 = vadd.f32 %v1632, 1.0
    %v1634 = vrcp.pop %v1633
    %v1635 = vmul.f32 1.0, %v1634
    %v1636 = vtanh.pop %v1622
    %v1637 = vxor.u32 %v1623, 2147483648
    %v1638 = vmul.f32 %v1637, 1.442695
    %v1639 = vpow.pop %v1638
    %v1640 = vadd.f32 %v1639, 1.0
    %v1641 = vrcp.pop %v1640
    %v1642 = vmul.f32 1.0, %v1641
    %v1643 = vmul.f32 %v1635, %v1470
    %v1644 = vmul.f32 %v1629, %v1636
    %v1645 = vadd.f32 %v1643, %v1644
    %v1646 = vtanh.pop %v1645
    %v1647 = vmul.f32 %v1642, %v1646
    %s1648 = scalar_lea.vmem [#allocation2], 224
    %v1649 = vld [vmem:[%s1648] sm:$0xff]
    %v1650 = vld [vmem:[%s1648 + $0x8] sm:$0xff]
    %v1651 = vld [vmem:[%s1648 + $0x10] sm:$0xff]
    %v1652 = vld [vmem:[%s1648 + $0x18] sm:$0xff]
    %1653 = vmatprep.subr.mxu0 %v365
    %1654 = vmatpush1.msra.mxu0 %v364
    %1655 = vmatprep.subr.mxu0 %v369
    %1656 = vmatpush1.msra.mxu0 %v368
    %1657 = vmatprep.subr.mxu0 %v373
    %1658 = vmatpush1.msra.mxu0 %v372
    %1659 = vmatprep.subr.mxu0 %v377
    %1660 = vmatpush1.msra.mxu0 %v376
    %1661 = vmatprep.subr.mxu0 %v381
    %1662 = vmatpush1.msra.mxu0 %v380
    %1663 = vmatprep.subr.mxu0 %v385
    %1664 = vmatpush1.msra.mxu0 %v384
    %1665 = vmatprep.subr.mxu0 %v389
    %1666 = vmatpush1.msra.mxu0 %v388
    %1667 = vmatprep.subr.mxu0 %v393
    %1668 = vmatpush1.msra.mxu0 %v392
    %1669 = vmatprep.subr.mxu0 %v397
    %1670 = vmatpush1.msra.mxu0 %v396
    %1671 = vmatprep.subr.mxu0 %v401
    %1672 = vmatpush1.msra.mxu0 %v400
    %1673 = vmatprep.subr.mxu0 %v405
    %1674 = vmatpush1.msra.mxu0 %v404
    %1675 = vmatprep.subr.mxu0 %v409
    %1676 = vmatpush1.msra.mxu0 %v408
    %1677 = vmatprep.subr.mxu0 %v413
    %1678 = vmatpush1.msra.mxu0 %v412
    %1679 = vmatprep.subr.mxu0 %v417
    %1680 = vmatpush1.msra.mxu0 %v416
    %1681 = vmatprep.subr.mxu0 %v421
    %1682 = vmatpush1.msra.mxu0 %v420
    %1683 = vmatprep.subr.mxu0 %v425
    %1684 = vmatpush1.msra.mxu0 %v424
    %1685 = vmatprep.subr.mxu0 0.0
    %1686 = vmatpush1.msra.mxu0 0.0
    %1687 = vmatprep.subr.mxu0 0.0
    %1688 = vmatpush1.msra.mxu0 0.0
    %1689 = vmatprep.subr.mxu0 0.0
    %1690 = vmatpush1.msra.mxu0 0.0
    %1691 = vmatprep.subr.mxu0 0.0
    %1692 = vmatpush1.msra.mxu0 0.0
    %1693 = vmatprep.subr.mxu0 0.0
    %1694 = vmatpush1.msra.mxu0 0.0
    %1695 = vmatprep.subr.mxu0 0.0
    %1696 = vmatpush1.msra.mxu0 0.0
    %1697 = vmatprep.subr.mxu0 0.0
    %1698 = vmatpush1.msra.mxu0 0.0
    %1699 = vmatprep.subr.mxu0 0.0
    %1700 = vmatpush1.msra.mxu0 0.0
    %1701 = vmatprep.subr.mxu0 0.0
    %1702 = vmatpush1.msra.mxu0 0.0
    %1703 = vmatprep.subr.mxu0 0.0
    %1704 = vmatpush1.msra.mxu0 0.0
    %1705 = vmatprep.subr.mxu0 0.0
    %1706 = vmatpush1.msra.mxu0 0.0
    %1707 = vmatprep.subr.mxu0 0.0
    %1708 = vmatpush1.msra.mxu0 0.0
    %1709 = vmatprep.subr.mxu0 0.0
    %1710 = vmatpush1.msra.mxu0 0.0
    %1711 = vmatprep.subr.mxu0 0.0
    %1712 = vmatpush1.msra.mxu0 0.0
    %1713 = vmatprep.subr.mxu0 0.0
    %1714 = vmatpush1.msra.mxu0 0.0
    %1715 = vmatprep.subr.mxu0 0.0
    %1716 = vmatpush1.msra.mxu0 0.0
    %1717 = vmatprep.mubr.f32.mxu0 0.0
    %1718 = vmatmul.mubr.f32.gmra.mrb[0].mxu0 %v1647
    %v1719 = vpop.f32.mrb[0].mxu0
    %v1720 = vadd.f32 0.0, %v1719
    %v1721 = vpop.f32.mrb[0].mxu0
    %v1722 = vadd.f32 0.0, %v1721
    %1723 = vdwg.mxu0
    %1724 = vmatprep.subr.mxu0 %v367
    %1725 = vmatpush1.msra.mxu0 %v366
    %1726 = vmatprep.subr.mxu0 %v371
    %1727 = vmatpush1.msra.mxu0 %v370
    %1728 = vmatprep.subr.mxu0 %v375
    %1729 = vmatpush1.msra.mxu0 %v374
    %1730 = vmatprep.subr.mxu0 %v379
    %1731 = vmatpush1.msra.mxu0 %v378
    %1732 = vmatprep.subr.mxu0 %v383
    %1733 = vmatpush1.msra.mxu0 %v382
    %1734 = vmatprep.subr.mxu0 %v387
    %1735 = vmatpush1.msra.mxu0 %v386
    %1736 = vmatprep.subr.mxu0 %v391
    %1737 = vmatpush1.msra.mxu0 %v390
    %1738 = vmatprep.subr.mxu0 %v395
    %1739 = vmatpush1.msra.mxu0 %v394
    %1740 = vmatprep.subr.mxu0 %v399
    %1741 = vmatpush1.msra.mxu0 %v398
    %1742 = vmatprep.subr.mxu0 %v403
    %1743 = vmatpush1.msra.mxu0 %v402
    %1744 = vmatprep.subr.mxu0 %v407
    %1745 = vmatpush1.msra.mxu0 %v406
    %1746 = vmatprep.subr.mxu0 %v411
    %1747 = vmatpush1.msra.mxu0 %v410
    %1748 = vmatprep.subr.mxu0 %v415
    %1749 = vmatpush1.msra.mxu0 %v414
    %1750 = vmatprep.subr.mxu0 %v419
    %1751 = vmatpush1.msra.mxu0 %v418
    %1752 = vmatprep.subr.mxu0 %v423
    %1753 = vmatpush1.msra.mxu0 %v422
    %1754 = vmatprep.subr.mxu0 %v427
    %1755 = vmatpush1.msra.mxu0 %v426
    %1756 = vmatprep.subr.mxu0 0.0
    %1757 = vmatpush1.msra.mxu0 0.0
    %1758 = vmatprep.subr.mxu0 0.0
    %1759 = vmatpush1.msra.mxu0 0.0
    %1760 = vmatprep.subr.mxu0 0.0
    %1761 = vmatpush1.msra.mxu0 0.0
    %1762 = vmatprep.subr.mxu0 0.0
    %1763 = vmatpush1.msra.mxu0 0.0
    %1764 = vmatprep.subr.mxu0 0.0
    %1765 = vmatpush1.msra.mxu0 0.0
    %1766 = vmatprep.subr.mxu0 0.0
    %1767 = vmatpush1.msra.mxu0 0.0
    %1768 = vmatprep.subr.mxu0 0.0
    %1769 = vmatpush1.msra.mxu0 0.0
    %1770 = vmatprep.subr.mxu0 0.0
    %1771 = vmatpush1.msra.mxu0 0.0
    %1772 = vmatprep.subr.mxu0 0.0
    %1773 = vmatpush1.msra.mxu0 0.0
    %1774 = vmatprep.subr.mxu0 0.0
    %1775 = vmatpush1.msra.mxu0 0.0
    %1776 = vmatprep.subr.mxu0 0.0
    %1777 = vmatpush1.msra.mxu0 0.0
    %1778 = vmatprep.subr.mxu0 0.0
    %1779 = vmatpush1.msra.mxu0 0.0
    %1780 = vmatprep.subr.mxu0 0.0
    %1781 = vmatpush1.msra.mxu0 0.0
    %1782 = vmatprep.subr.mxu0 0.0
    %1783 = vmatpush1.msra.mxu0 0.0
    %1784 = vmatprep.subr.mxu0 0.0
    %1785 = vmatpush1.msra.mxu0 0.0
    %1786 = vmatprep.subr.mxu0 0.0
    %1787 = vmatpush1.msra.mxu0 0.0
    %1788 = vmatprep.mubr.f32.mxu0 0.0
    %1789 = vmatmul.mubr.f32.gmra.mrb[0].mxu0 %v1647
    %v1790 = vpop.f32.mrb[0].mxu0
    %v1791 = vadd.f32 0.0, %v1790
    %v1792 = vpop.f32.mrb[0].mxu0
    %v1793 = vadd.f32 0.0, %v1792
    %1794 = vdwg.mxu0
    %v1795 = vadd.f32 %v1649, %v1720
    %v1796 = vadd.f32 %v1650, %v1722
    %v1797 = vadd.f32 %v1651, %v1791
    %v1798 = vadd.f32 %v1652, %v1793
    %v1799 = vxor.u32 %v1795, 2147483648
    %v1800 = vmul.f32 %v1799, 1.442695
    %v1801 = vpow.pop %v1800
    %v1802 = vadd.f32 %v1801, 1.0
    %v1803 = vrcp.pop %v1802
    %v1804 = vmul.f32 1.0, %v1803
    %v1805 = vxor.u32 %v1796, 2147483648
    %v1806 = vmul.f32 %v1805, 1.442695
    %v1807 = vpow.pop %v1806
    %v1808 = vadd.f32 %v1807, 1.0
    %v1809 = vrcp.pop %v1808
    %v1810 = vmul.f32 1.0, %v1809
    %v1811 = vtanh.pop %v1797
    %v1812 = vxor.u32 %v1798, 2147483648
    %v1813 = vmul.f32 %v1812, 1.442695
    %v1814 = vpow.pop %v1813
    %v1815 = vadd.f32 %v1814, 1.0
    %v1816 = vrcp.pop %v1815
    %v1817 = vmul.f32 1.0, %v1816
    %v1818 = vmul.f32 %v1810, %v1645
    %v1819 = vmul.f32 %v1804, %v1811
    %v1820 = vadd.f32 %v1818, %v1819
    %v1821 = vtanh.pop %v1820
    %v1822 = vmul.f32 %v1817, %v1821
    %v1823 = vld [vmem:[%s4] sm:$0xff]
    %v1824 = vld [vmem:[%s4 + $0x8] sm:$0xff]
    %v1825 = vld [vmem:[%s4 + $0x10] sm:$0xff]
    %v1826 = vld [vmem:[%s4 + $0x18] sm:$0xff]
    %v1827 = vld [vmem:[%s4 + $0x20] sm:$0xff]
    %v1828 = vld [vmem:[%s4 + $0x28] sm:$0xff]
    %v1829 = vld [vmem:[%s4 + $0x30] sm:$0xff]
    %v1830 = vld [vmem:[%s4 + $0x38] sm:$0xff]
    %v1831 = vld [vmem:[%s4 + $0x40] sm:$0xff]
    %v1832 = vld [vmem:[%s4 + $0x48] sm:$0xff]
    %v1833 = vld [vmem:[%s4 + $0x50] sm:$0xff]
    %v1834 = vld [vmem:[%s4 + $0x58] sm:$0xff]
    %v1835 = vld [vmem:[%s4 + $0x60] sm:$0xff]
    %v1836 = vld [vmem:[%s4 + $0x68] sm:$0xff]
    %v1837 = vld [vmem:[%s4 + $0x70] sm:$0xff]
    %v1838 = vld [vmem:[%s4 + $0x78] sm:$0xff]
    %v1839 = vld [vmem:[#allocation3] sm:$0x1]
    %v1841 = vlaneseq
    %v1842 = vshrl.u32 %v1841, 7
    %v1843 = vsub.s32 0, %v1842
    %v1844 = vrot.slane %v1839, %v1843
    %1846 = vmatprep.subr.mxu0 0.0
    %1847 = vmatpush1.msra.mxu0 %v1823
    %1848 = vmatprep.subr.mxu0 0.0
    %1849 = vmatpush1.msra.mxu0 %v1824
    %1850 = vmatprep.subr.mxu0 0.0
    %1851 = vmatpush1.msra.mxu0 %v1825
    %1852 = vmatprep.subr.mxu0 0.0
    %1853 = vmatpush1.msra.mxu0 %v1826
    %1854 = vmatprep.subr.mxu0 0.0
    %1855 = vmatpush1.msra.mxu0 %v1827
    %1856 = vmatprep.subr.mxu0 0.0
    %1857 = vmatpush1.msra.mxu0 %v1828
    %1858 = vmatprep.subr.mxu0 0.0
    %1859 = vmatpush1.msra.mxu0 %v1829
    %1860 = vmatprep.subr.mxu0 0.0
    %1861 = vmatpush1.msra.mxu0 %v1830
    %1862 = vmatprep.subr.mxu0 0.0
    %1863 = vmatpush1.msra.mxu0 %v1831
    %1864 = vmatprep.subr.mxu0 0.0
    %1865 = vmatpush1.msra.mxu0 %v1832
    %1866 = vmatprep.subr.mxu0 0.0
    %1867 = vmatpush1.msra.mxu0 %v1833
    %1868 = vmatprep.subr.mxu0 0.0
    %1869 = vmatpush1.msra.mxu0 %v1834
    %1870 = vmatprep.subr.mxu0 0.0
    %1871 = vmatpush1.msra.mxu0 %v1835
    %1872 = vmatprep.subr.mxu0 0.0
    %1873 = vmatpush1.msra.mxu0 %v1836
    %1874 = vmatprep.subr.mxu0 0.0
    %1875 = vmatpush1.msra.mxu0 %v1837
    %1876 = vmatprep.subr.mxu0 0.0
    %1877 = vmatpush1.msra.mxu0 %v1838
    %1878 = vmatprep.subr.mxu0 0.0
    %1879 = vmatpush1.msra.mxu0 0.0
    %1880 = vmatprep.subr.mxu0 0.0
    %1881 = vmatpush1.msra.mxu0 0.0
    %1882 = vmatprep.subr.mxu0 0.0
    %1883 = vmatpush1.msra.mxu0 0.0
    %1884 = vmatprep.subr.mxu0 0.0
    %1885 = vmatpush1.msra.mxu0 0.0
    %1886 = vmatprep.subr.mxu0 0.0
    %1887 = vmatpush1.msra.mxu0 0.0
    %1888 = vmatprep.subr.mxu0 0.0
    %1889 = vmatpush1.msra.mxu0 0.0
    %1890 = vmatprep.subr.mxu0 0.0
    %1891 = vmatpush1.msra.mxu0 0.0
    %1892 = vmatprep.subr.mxu0 0.0
    %1893 = vmatpush1.msra.mxu0 0.0
    %1894 = vmatprep.subr.mxu0 0.0
    %1895 = vmatpush1.msra.mxu0 0.0
    %1896 = vmatprep.subr.mxu0 0.0
    %1897 = vmatpush1.msra.mxu0 0.0
    %1898 = vmatprep.subr.mxu0 0.0
    %1899 = vmatpush1.msra.mxu0 0.0
    %1900 = vmatprep.subr.mxu0 0.0
    %1901 = vmatpush1.msra.mxu0 0.0
    %1902 = vmatprep.subr.mxu0 0.0
    %1903 = vmatpush1.msra.mxu0 0.0
    %1904 = vmatprep.subr.mxu0 0.0
    %1905 = vmatpush1.msra.mxu0 0.0
    %1906 = vmatprep.subr.mxu0 0.0
    %1907 = vmatpush1.msra.mxu0 0.0
    %1908 = vmatprep.subr.mxu0 0.0
    %1909 = vmatpush1.msra.mxu0 0.0
    %1910 = vmatprep.mubr.f32.mxu0 0.0
    %1911 = vmatmul.mubr.f32.gmra.mrb[0].mxu0 %v1822
    %v1912 = vpop.f32.mrb[0].mxu0
    %v1913 = vadd.f32 %v1844, %v1912
    %v1914 = vpop.f32.mrb[0].mxu0
    %1915 = vdwg.mxu0
    %v1916 = vxor.u32 %v1913, 2147483648
    %v1917 = vmul.f32 %v1916, 1.442695
    %v1918 = vpow.pop %v1917
    %v1919 = vadd.f32 %v1918, 1.0
    %v1920 = vrcp.pop %v1919
    %v1921 = vmul.f32 1.0, %v1920
    %vm1922 = vcmask 7168
    %1923 = vst.msk [vmem:[%s6] sm:$0xff] %vm1922, %v1921
    // Predicated region
    $region30: #{tpu_custom_call.1} parent=1 // pred_check
      _
    $region31: #{tpu_custom_call.1} parent=1 // pred_check_branch
      %1925 = sbr.rel (0) target = $region33
    $region32: #{tpu_custom_call.1} parent=1 // pred_region
      _
    $region33: #{tpu_custom_call.1} parent=1 // pred_fallthru
      _
    // Predicated region
    $region34: #{tpu_custom_call.1} parent=1 // pred_check
      _
    $region35: #{tpu_custom_call.1} parent=1 // pred_check_branch
      %1927 = sbr.rel (0) target = $region37
    $region36: #{tpu_custom_call.1} parent=1 // pred_region
      _
    $region37: #{tpu_custom_call.1} parent=1 // pred_fallthru
      _
    %1928 = vsyncpa [#allocation5], 1

</llo_original>
